<compile_context>
chip_gen: v6e
topology: v6e:2x2x1
jax: 0.10.0
libtpu: 0.0.40
codegen_flags: <defaults>
</compile_context>

<pallas_src>
import functools

import jax
import jax.numpy as jnp
from jax import lax
from jax.experimental import pallas as pl
from jax.experimental.pallas import tpu as pltpu


def make_divisible(v, divisor=8, min_value=None):
    if min_value is None:
        min_value = divisor
    new_v = max(min_value, int(v + divisor / 2) // divisor * divisor)
    if new_v < 0.9 * v:
        new_v += divisor
    return new_v


# ---- static configuration ----------------------------------------------------
IN_C = make_divisible(8, 8)               # 8
OUT_C = make_divisible(8, 8)              # 8
EXP_C = make_divisible(int(8 * 4.0), 8)   # 32
SQ_C = make_divisible(EXP_C // 4, 8)      # 8
KH = KW = 3
PAD = 1
N, H, W = 2, 16, 16
HW = H * W                                # 256 (lane-dense spatial axis, per image)
K_IM2COL = KH * KW * IN_C + 1             # 73 = 72 im2col rows + ones row (folded BN1 bias)
BN_EPS = 1e-5
assert W & (W - 1) == 0 and HW & (HW - 1) == 0   # powers of two (bit-mask lane indexing)

# packed-parameter column offsets
DW_OFF = 0                                # 9 depthwise taps (BN2 scale folded in)
BN2B_COL = DW_OFF + KH * KW               # 9
FC2B_COL = BN2B_COL + 1                   # 10
FC1W_OFF = FC2B_COL + 1                   # 11 (.. +SQ_C)
FC2W_OFF = FC1W_OFF + SQ_C                # 19 (.. +SQ_C)
FC1B_OFF = FC2W_OFF + SQ_C                # 27 (.. +SQ_C, row-replicated fc1 bias)
P32_COLS = FC1B_OFF + SQ_C                # 35

W3_OFF = 0                                # 1x1 projection (BN3 scale folded in)
BN3B_COL = EXP_C                          # 32
P8_COLS = EXP_C + 1                       # 33


# ---- Pallas kernel -------------------------------------------------------------
def inverted_residual_kernel(x_ref, w1_ref, p32_ref, p8_ref, out_ref, *, ipb):
    """One grid step == `ipb` images, everything in (channels, ipb*H*W) lane-dense layout."""
    lanes = ipb * HW
    xT = x_ref[0]                      # (IN_C, lanes) f32 : conv input AND residual
    w1pT = w1_ref[...]                 # (EXP_C, K_IM2COL) bf16, BN1 folded, last col = bias
    p32 = p32_ref[...]                 # (EXP_C, P32_COLS) f32 packed per-EXP_C params
    p8 = p8_ref[...]                   # (OUT_C, P8_COLS) f32 packed projection params

    # Within-image flat index q = h*W + w and column w (HW, W are powers of two, so the
    # same masks stay correct when several images share the lane axis).
    pid = lax.broadcasted_iota(jnp.int32, (1, lanes), 1)
    q = pid & (HW - 1)
    ww = pid & (W - 1)

    def tap_mask(dh, dw):
        conds = []
        if dh > 0:
            conds.append(q < (H - dh) * W)
        elif dh < 0:
            conds.append(q >= (-dh) * W)
        if dw > 0:
            conds.append(ww < (W - dw))
        elif dw < 0:
            conds.append(ww >= -dw)
        if not conds:
            return None
        m = conds[0]
        for c in conds[1:]:
            m = jnp.logical_and(m, c)
        return m

    # 9 taps: (kh, kw, flat shift, validity mask) -- shared by im2col and depthwise.
    taps = [(kh, kw, (kh - PAD) * W + (kw - PAD), tap_mask(kh - PAD, kw - PAD))
            for kh in range(KH) for kw in range(KW)]

    def shifted(y, s, mask):
        # z[:, p] = y[:, p + s] where the tap is inside the image, 0 outside.
        # In-bounds taps never cross an image boundary, so a circular lane roll is exact.
        if s != 0:
            y = pltpu.roll(y, shift=(-s) % lanes, axis=1)    # XLU lane rotate (free slot)
        if mask is not None:
            y = jnp.where(mask, y, 0.0)
        return y

    # --- 1) expansion 3x3 conv as ONE bf16 im2col matmul (BN1 pre-folded) + ReLU -------
    patchesT = jnp.concatenate(
        [shifted(xT, s, m) for (_, _, s, m) in taps]
        + [jnp.ones((1, lanes), jnp.float32)],               # ones row drives the BN1 bias
        axis=0)                                              # (K_IM2COL, lanes)
    y1 = jnp.dot(w1pT, patchesT.astype(jnp.bfloat16),
                 preferred_element_type=jnp.float32)         # (EXP_C, lanes)
    y1 = jnp.maximum(y1, 0.0)

    # --- 2) depthwise 3x3 conv via masked lane rolls (BN2 scale pre-folded) + ReLU -----
    y2 = jnp.zeros((EXP_C, lanes), jnp.float32)
    for idx, (_, _, s, m) in enumerate(taps):
        c0 = DW_OFF + idx
        y2 = y2 + shifted(y1, s, m) * p32[:, c0:c0 + 1]
    y2 = jnp.maximum(y2 + p32[:, BN2B_COL:BN2B_COL + 1], 0.0)

    # --- 3+4) SqueezeExcitation (per image, on the VPU) folded into the 1x1 projection --
    fc1w = p32[:, FC1W_OFF:FC1W_OFF + SQ_C]                  # (EXP_C, SQ_C)
    fc2w = p32[:, FC2W_OFF:FC2W_OFF + SQ_C]                  # (EXP_C, SQ_C)  (= fc2^T)
    fc2b = p32[:, FC2B_COL:FC2B_COL + 1]                     # (EXP_C, 1)
    fc1b = p32[0:1, FC1B_OFF:FC1B_OFF + SQ_C]                # (1, SQ_C)  (row-replicated)
    p8w = p8[:, W3_OFF:W3_OFF + EXP_C]                       # (OUT_C, EXP_C), BN3 folded
    bn3b = p8[:, BN3B_COL:BN3B_COL + 1]                      # (OUT_C, 1)

    y4_parts = []
    for img in range(ipb):
        y2i = y2[:, img * HW:(img + 1) * HW]                 # 128-aligned lane slice
        avg = jnp.mean(y2i, axis=1, keepdims=True)           # (EXP_C, 1)  global avg pool
        t1 = jnp.maximum(jnp.sum(fc1w * avg, axis=0, keepdims=True) + fc1b, 0.0)  # (1,SQ_C)
        s2 = jnp.sum(fc2w * t1, axis=1, keepdims=True) + fc2b                      # (EXP_C,1)
        scale = jnp.clip(s2 * (1.0 / 6.0) + 0.5, 0.0, 1.0)   # Hardsigmoid
        # Fold the SE scale into the tiny (OUT_C, EXP_C) weight instead of the activation.
        w3s = (p8w * scale.T).astype(jnp.bfloat16)
        y4_parts.append(jnp.dot(w3s, y2i.astype(jnp.bfloat16),
                                preferred_element_type=jnp.float32) + bn3b)
    y4 = y4_parts[0] if ipb == 1 else jnp.concatenate(y4_parts, axis=1)

    # --- 5) residual shortcut (StochasticDepth == identity at inference) ---------------
    # TODO(synk): StochasticDepth row dropout (training only) has no inference effect.
    out_ref[0] = xT + y4                                     # dense (OUT_C, lanes) store


# ---- wrapper --------------------------------------------------------------------
def _images_per_step(n_images):
    """Single-TC chips (v5e/v6e): batch all images into one grid step.
    Multi-TC chips (v7x, v5p, v4, ...): one image per step, sharded via 'parallel'."""
    kind = ""
    try:
        kind = jax.devices()[0].device_kind.lower()
    except Exception:
        pass
    single_tc = any(t in kind for t in
                    ("v5e", "v5 lite", "v5lite", "v6e", "v6 lite", "v6lite"))
    return n_images if single_tc else 1


def inverted_residual(x_nchw, packed, images_per_step=None):
    w1pT, p32, p8 = packed
    n, c, h, w = x_nchw.shape
    assert (c, h, w) == (IN_C, H, W)

    ipb = images_per_step if images_per_step is not None else _images_per_step(n)
    if ipb < 1 or n % ipb != 0:
        ipb = 1
    steps = n // ipb
    lanes = ipb * HW

    # Free reshape of NCHW to (N, C, H*W); then lay `ipb` images side by side on the
    # lane axis of each grid step (pure wrapper-side layout plumbing).
    xT = x_nchw.reshape(n, IN_C, HW).astype(jnp.float32)
    xT = xT.reshape(steps, ipb, IN_C, HW).transpose(0, 2, 1, 3).reshape(steps, IN_C, lanes)

    kernel = functools.partial(inverted_residual_kernel, ipb=ipb)
    out = pl.pallas_call(
        kernel,
        out_shape=jax.ShapeDtypeStruct((steps, OUT_C, lanes), jnp.float32),
        grid=(steps,),
        in_specs=[
            pl.BlockSpec((1, IN_C, lanes), lambda i: (i, 0, 0)),
            pl.BlockSpec((EXP_C, K_IM2COL), lambda i: (0, 0)),
            pl.BlockSpec((EXP_C, P32_COLS), lambda i: (0, 0)),
            pl.BlockSpec((OUT_C, P8_COLS), lambda i: (0, 0)),
        ],
        out_specs=pl.BlockSpec((1, OUT_C, lanes), lambda i: (i, 0, 0)),
        compiler_params=pltpu.CompilerParams(dimension_semantics=("parallel",)),
    )(xT, w1pT, p32, p8)

    out = out.reshape(steps, OUT_C, ipb, HW).transpose(0, 2, 1, 3)
    return out.reshape(n, OUT_C, H, W)


# ---- deterministic parameter init (shapes from the PyTorch __init__) -------------
def init_params(key):
    ks = iter(jax.random.split(key, 32))

    def bn_fold(c):
        gamma = 1.0 + 0.1 * jax.random.normal(next(ks), (c,), jnp.float32)
        beta = 0.1 * jax.random.normal(next(ks), (c,), jnp.float32)
        mean = 0.1 * jax.random.normal(next(ks), (c,), jnp.float32)
        var = 1.0 + 0.5 * jax.random.uniform(next(ks), (c,), jnp.float32)
        scale = gamma / jnp.sqrt(var + BN_EPS)
        bias = beta - mean * scale
        return scale, bias

    # expansion conv: torch weight (EXP_C, IN_C, KH, KW) -> HWIO (KH, KW, IN_C, EXP_C)
    w1_t = 0.1 * jax.random.normal(next(ks), (EXP_C, IN_C, KH, KW), jnp.float32)
    w1 = jnp.transpose(w1_t, (2, 3, 1, 0))
    bn1s, bn1b = bn_fold(EXP_C)

    # depthwise conv: torch weight (EXP_C, 1, KH, KW) -> (KH, KW, EXP_C)
    w2_t = 0.1 * jax.random.normal(next(ks), (EXP_C, 1, KH, KW), jnp.float32)
    w2 = jnp.transpose(w2_t[:, 0], (1, 2, 0))
    bn2s, bn2b = bn_fold(EXP_C)

    # SE fc1 (Conv2d EXP_C->SQ_C 1x1) and fc2 (SQ_C->EXP_C 1x1)
    fc1w = 0.1 * jax.random.normal(next(ks), (SQ_C, EXP_C), jnp.float32).T   # (EXP_C, SQ_C)
    fc1b = 0.1 * jax.random.normal(next(ks), (SQ_C,), jnp.float32)
    fc2w = 0.1 * jax.random.normal(next(ks), (EXP_C, SQ_C), jnp.float32).T   # (SQ_C, EXP_C)
    fc2b = 0.1 * jax.random.normal(next(ks), (EXP_C,), jnp.float32)

    # projection 1x1: torch weight (OUT_C, EXP_C, 1, 1) -> (EXP_C, OUT_C)
    w3 = 0.1 * jax.random.normal(next(ks), (OUT_C, EXP_C), jnp.float32).T
    bn3s, bn3b = bn_fold(OUT_C)

    return (w1, bn1s, bn1b, w2, bn2s, bn2b, fc1w, fc1b, fc2w, fc2b, w3, bn3s, bn3b)


def pack_params(raw):
    (w1, bn1s, bn1b, w2, bn2s, bn2b, fc1w, fc1b, fc2w, fc2b, w3, bn3s, bn3b) = raw

    # im2col weight: (EXP_C, (kh*KW + kw)*IN_C + c); BN1 scale folded into the rows,
    # BN1 bias appended as the final column (driven by the ones row in patchesT).
    w1_flat = jnp.transpose(w1, (3, 0, 1, 2)).reshape(EXP_C, KH * KW * IN_C)
    w1pT = jnp.concatenate([w1_flat * bn1s[:, None], bn1b[:, None]],
                           axis=1).astype(jnp.bfloat16)               # (EXP_C, 73) bf16

    # depthwise taps, column = kh*KW + kw, BN2 scale folded in.
    dw = w2.reshape(KH * KW, EXP_C).T * bn2s[:, None]

    p32 = jnp.concatenate(
        [dw,                                                  # cols 0..8   depthwise taps
         bn2b[:, None],                                       # col 9       BN2 bias
         fc2b[:, None],                                       # col 10      SE fc2 bias
         fc1w,                                                # cols 11..18 SE fc1 weight
         fc2w.T,                                              # cols 19..26 SE fc2 weight^T
         jnp.broadcast_to(fc1b[None, :], (EXP_C, SQ_C))],     # cols 27..34 SE fc1 bias
        axis=1).astype(jnp.float32)                           # (EXP_C, 35)

    p8 = jnp.concatenate([w3.T * bn3s[:, None],               # BN3 scale folded projection
                          bn3b[:, None]],
                         axis=1).astype(jnp.float32)          # (OUT_C, 33)
    return (w1pT, p32, p8)


# ---- pure-JAX reference (eval-mode semantics of the PyTorch module) ---------------
def reference(x_nchw, params):
    (w1, bn1s, bn1b, w2, bn2s, bn2b, fc1w, fc1b, fc2w, fc2b, w3, bn3s, bn3b) = params
    x = jnp.transpose(x_nchw, (0, 2, 3, 1))
    dn = ('NHWC', 'HWIO', 'NHWC')
    hp = lax.Precision.HIGHEST
    y = lax.conv_general_dilated(x, w1, (1, 1), ((PAD, PAD), (PAD, PAD)),
                                 dimension_numbers=dn, precision=hp)
    y = jnp.maximum(y * bn1s + bn1b, 0.0)
    y = lax.conv_general_dilated(y, w2[:, :, None, :], (1, 1), ((PAD, PAD), (PAD, PAD)),
                                 dimension_numbers=dn, feature_group_count=EXP_C,
                                 precision=hp)
    y = jnp.maximum(y * bn2s + bn2b, 0.0)
    avg = jnp.mean(y, axis=(1, 2), keepdims=True)
    s = jnp.maximum(jnp.einsum('nijc,cs->nijs', avg, fc1w, precision=hp) + fc1b, 0.0)
    s = jnp.einsum('nijs,sc->nijc', s, fc2w, precision=hp) + fc2b
    y = y * jnp.clip(s / 6.0 + 0.5, 0.0, 1.0)
    y = jnp.einsum('nhwc,co->nhwo', y, w3, precision=hp) * bn3s + bn3b
    return jnp.transpose(x + y, (0, 3, 1, 2))


if __name__ == "__main__":
    key = jax.random.PRNGKey(0)
    kx, kp = jax.random.split(key)
    x = jax.random.normal(kx, (N, IN_C, H, W), jnp.float32)   # PyTorch-style NCHW input
    raw = init_params(kp)
    packed = pack_params(raw)

    out = inverted_residual(x, packed)
    out = jax.block_until_ready(out)
    assert out.shape == (N, OUT_C, H, W)

    ref = reference(x, raw)
    # bf16 MXU operands vs a HIGHEST-precision f32 reference: observed error is well
    # below the 5e-3 tolerance (weights are ~0.1 scale, activations ~1).
    if not jnp.allclose(out, ref, rtol=5e-3, atol=5e-3):
        raise AssertionError(f"mismatch, max abs diff = {jnp.max(jnp.abs(out - ref))}")
    print("KERNEL_OK")
</pallas_src>

<mosaic_0001>
module attributes {stable_mosaic.version = 11 : i64} {
  func.func @inverted_residual_kernel(%arg0: i32, %arg1: memref<1x8x256xf32, #tpu.memory_space<vmem>>, %arg2: memref<32x73xbf16, #tpu.memory_space<vmem>>, %arg3: memref<32x35xf32, #tpu.memory_space<vmem>>, %arg4: memref<8x33xf32, #tpu.memory_space<vmem>>, %arg5: memref<1x8x256xf32, #tpu.memory_space<vmem>>) attributes {dimension_semantics = [#tpu.dimension_semantics<parallel>], iteration_bounds = array<i64: 2>, scalar_prefetch = 0 : i64, scratch_operands = 0 : i64, tpu.core_type = #tpu.core_type<tc>, window_params = [{transform_indices = @transform_0, window_bounds = array<i64: 1, 8, 256>}, {pipeline_mode = #tpu.pipeline_mode<synchronous>, transform_indices = @transform_1, window_bounds = array<i64: 32, 73>}, {pipeline_mode = #tpu.pipeline_mode<synchronous>, transform_indices = @transform_2, window_bounds = array<i64: 32, 35>}, {pipeline_mode = #tpu.pipeline_mode<synchronous>, transform_indices = @transform_3, window_bounds = array<i64: 8, 33>}, {transform_indices = @transform_4, window_bounds = array<i64: 1, 8, 256>}]} {
    %c0 = arith.constant 0 : index
    %c0_0 = arith.constant 0 : index
    %c0_1 = arith.constant 0 : index
    %0 = vector.load %arg1[%c0, %c0_0, %c0_1] : memref<1x8x256xf32, #tpu.memory_space<vmem>>, vector<1x8x256xf32>
    %1 = vector.shape_cast %0 : vector<1x8x256xf32> to vector<8x256xf32>
    %c0_2 = arith.constant 0 : index
    %c0_3 = arith.constant 0 : index
    %2 = vector.load %arg2[%c0_2, %c0_3] : memref<32x73xbf16, #tpu.memory_space<vmem>>, vector<32x73xbf16>
    %c0_4 = arith.constant 0 : index
    %c0_5 = arith.constant 0 : index
    %3 = vector.load %arg3[%c0_4, %c0_5] : memref<32x35xf32, #tpu.memory_space<vmem>>, vector<32x35xf32>
    %c0_6 = arith.constant 0 : index
    %c0_7 = arith.constant 0 : index
    %4 = vector.load %arg4[%c0_6, %c0_7] : memref<8x33xf32, #tpu.memory_space<vmem>>, vector<8x33xf32>
    %5 = tpu.iota {dimensions = array<i32: 1>} : vector<1x256xi32>
    %c255_i32 = arith.constant 255 : i32
    %6 = vector.broadcast %c255_i32 : i32 to vector<1x256xi32>
    %7 = arith.andi %5, %6 : vector<1x256xi32>
    %c15_i32 = arith.constant 15 : i32
    %8 = vector.broadcast %c15_i32 : i32 to vector<1x256xi32>
    %9 = arith.andi %5, %8 : vector<1x256xi32>
    %c16_i32 = arith.constant 16 : i32
    %10 = vector.broadcast %c16_i32 : i32 to vector<1x256xi32>
    %11 = arith.cmpi sge, %7, %10 : vector<1x256xi32>
    %c1_i32 = arith.constant 1 : i32
    %12 = vector.broadcast %c1_i32 : i32 to vector<1x256xi32>
    %13 = arith.cmpi sge, %9, %12 : vector<1x256xi32>
    %14 = arith.andi %11, %13 : vector<1x256xi1>
    %c16_i32_8 = arith.constant 16 : i32
    %15 = vector.broadcast %c16_i32_8 : i32 to vector<1x256xi32>
    %16 = arith.cmpi sge, %7, %15 : vector<1x256xi32>
    %c16_i32_9 = arith.constant 16 : i32
    %17 = vector.broadcast %c16_i32_9 : i32 to vector<1x256xi32>
    %18 = arith.cmpi sge, %7, %17 : vector<1x256xi32>
    %c15_i32_10 = arith.constant 15 : i32
    %19 = vector.broadcast %c15_i32_10 : i32 to vector<1x256xi32>
    %20 = arith.cmpi slt, %9, %19 : vector<1x256xi32>
    %21 = arith.andi %18, %20 : vector<1x256xi1>
    %c1_i32_11 = arith.constant 1 : i32
    %22 = vector.broadcast %c1_i32_11 : i32 to vector<1x256xi32>
    %23 = arith.cmpi sge, %9, %22 : vector<1x256xi32>
    %c15_i32_12 = arith.constant 15 : i32
    %24 = vector.broadcast %c15_i32_12 : i32 to vector<1x256xi32>
    %25 = arith.cmpi slt, %9, %24 : vector<1x256xi32>
    %c240_i32 = arith.constant 240 : i32
    %26 = vector.broadcast %c240_i32 : i32 to vector<1x256xi32>
    %27 = arith.cmpi slt, %7, %26 : vector<1x256xi32>
    %c1_i32_13 = arith.constant 1 : i32
    %28 = vector.broadcast %c1_i32_13 : i32 to vector<1x256xi32>
    %29 = arith.cmpi sge, %9, %28 : vector<1x256xi32>
    %30 = arith.andi %27, %29 : vector<1x256xi1>
    %c240_i32_14 = arith.constant 240 : i32
    %31 = vector.broadcast %c240_i32_14 : i32 to vector<1x256xi32>
    %32 = arith.cmpi slt, %7, %31 : vector<1x256xi32>
    %c240_i32_15 = arith.constant 240 : i32
    %33 = vector.broadcast %c240_i32_15 : i32 to vector<1x256xi32>
    %34 = arith.cmpi slt, %7, %33 : vector<1x256xi32>
    %c15_i32_16 = arith.constant 15 : i32
    %35 = vector.broadcast %c15_i32_16 : i32 to vector<1x256xi32>
    %36 = arith.cmpi slt, %9, %35 : vector<1x256xi32>
    %37 = arith.andi %34, %36 : vector<1x256xi1>
    %c17_i32 = arith.constant 17 : i32
    %38 = tpu.dynamic_rotate %1 by %c17_i32 dim 1 : vector<8x256xf32>, i32 -> vector<8x256xf32>
    %cst = arith.constant 0.000000e+00 : f32
    %39 = vector.shape_cast %14 : vector<1x256xi1> to vector<1x256xi1>
    %40 = vector.broadcast %39 : vector<1x256xi1> to vector<8x256xi1>
    %41 = vector.broadcast %cst : f32 to vector<8x256xf32>
    %42 = arith.select %40, %38, %41 : vector<8x256xi1>, vector<8x256xf32>
    %c16_i32_17 = arith.constant 16 : i32
    %43 = tpu.dynamic_rotate %1 by %c16_i32_17 dim 1 : vector<8x256xf32>, i32 -> vector<8x256xf32>
    %cst_18 = arith.constant 0.000000e+00 : f32
    %44 = vector.shape_cast %16 : vector<1x256xi1> to vector<1x256xi1>
    %45 = vector.broadcast %44 : vector<1x256xi1> to vector<8x256xi1>
    %46 = vector.broadcast %cst_18 : f32 to vector<8x256xf32>
    %47 = arith.select %45, %43, %46 : vector<8x256xi1>, vector<8x256xf32>
    %c15_i32_19 = arith.constant 15 : i32
    %48 = tpu.dynamic_rotate %1 by %c15_i32_19 dim 1 : vector<8x256xf32>, i32 -> vector<8x256xf32>
    %cst_20 = arith.constant 0.000000e+00 : f32
    %49 = vector.shape_cast %21 : vector<1x256xi1> to vector<1x256xi1>
    %50 = vector.broadcast %49 : vector<1x256xi1> to vector<8x256xi1>
    %51 = vector.broadcast %cst_20 : f32 to vector<8x256xf32>
    %52 = arith.select %50, %48, %51 : vector<8x256xi1>, vector<8x256xf32>
    %c1_i32_21 = arith.constant 1 : i32
    %53 = tpu.dynamic_rotate %1 by %c1_i32_21 dim 1 : vector<8x256xf32>, i32 -> vector<8x256xf32>
    %cst_22 = arith.constant 0.000000e+00 : f32
    %54 = vector.shape_cast %23 : vector<1x256xi1> to vector<1x256xi1>
    %55 = vector.broadcast %54 : vector<1x256xi1> to vector<8x256xi1>
    %56 = vector.broadcast %cst_22 : f32 to vector<8x256xf32>
    %57 = arith.select %55, %53, %56 : vector<8x256xi1>, vector<8x256xf32>
    %c255_i32_23 = arith.constant 255 : i32
    %58 = tpu.dynamic_rotate %1 by %c255_i32_23 dim 1 : vector<8x256xf32>, i32 -> vector<8x256xf32>
    %cst_24 = arith.constant 0.000000e+00 : f32
    %59 = vector.shape_cast %25 : vector<1x256xi1> to vector<1x256xi1>
    %60 = vector.broadcast %59 : vector<1x256xi1> to vector<8x256xi1>
    %61 = vector.broadcast %cst_24 : f32 to vector<8x256xf32>
    %62 = arith.select %60, %58, %61 : vector<8x256xi1>, vector<8x256xf32>
    %c241_i32 = arith.constant 241 : i32
    %63 = tpu.dynamic_rotate %1 by %c241_i32 dim 1 : vector<8x256xf32>, i32 -> vector<8x256xf32>
    %cst_25 = arith.constant 0.000000e+00 : f32
    %64 = vector.shape_cast %30 : vector<1x256xi1> to vector<1x256xi1>
    %65 = vector.broadcast %64 : vector<1x256xi1> to vector<8x256xi1>
    %66 = vector.broadcast %cst_25 : f32 to vector<8x256xf32>
    %67 = arith.select %65, %63, %66 : vector<8x256xi1>, vector<8x256xf32>
    %c240_i32_26 = arith.constant 240 : i32
    %68 = tpu.dynamic_rotate %1 by %c240_i32_26 dim 1 : vector<8x256xf32>, i32 -> vector<8x256xf32>
    %cst_27 = arith.constant 0.000000e+00 : f32
    %69 = vector.shape_cast %32 : vector<1x256xi1> to vector<1x256xi1>
    %70 = vector.broadcast %69 : vector<1x256xi1> to vector<8x256xi1>
    %71 = vector.broadcast %cst_27 : f32 to vector<8x256xf32>
    %72 = arith.select %70, %68, %71 : vector<8x256xi1>, vector<8x256xf32>
    %c239_i32 = arith.constant 239 : i32
    %73 = tpu.dynamic_rotate %1 by %c239_i32 dim 1 : vector<8x256xf32>, i32 -> vector<8x256xf32>
    %cst_28 = arith.constant 0.000000e+00 : f32
    %74 = vector.shape_cast %37 : vector<1x256xi1> to vector<1x256xi1>
    %75 = vector.broadcast %74 : vector<1x256xi1> to vector<8x256xi1>
    %76 = vector.broadcast %cst_28 : f32 to vector<8x256xf32>
    %77 = arith.select %75, %73, %76 : vector<8x256xi1>, vector<8x256xf32>
    %cst_29 = arith.constant 1.000000e+00 : f32
    %78 = vector.broadcast %cst_29 : f32 to vector<1x256xf32>
    %79 = tpu.concatenate %42, %47, %52, %57, %1, %62, %67, %72, %77, %78 in 0 : vector<8x256xf32>, vector<8x256xf32>, vector<8x256xf32>, vector<8x256xf32>, vector<8x256xf32>, vector<8x256xf32>, vector<8x256xf32>, vector<8x256xf32>, vector<8x256xf32>, vector<1x256xf32> -> vector<73x256xf32>
    %80 = arith.truncf %79 : vector<73x256xf32> to vector<73x256xbf16>
    %cst_30 = arith.constant dense<0.000000e+00> : vector<32x256xf32>
    %81 = tpu.matmul %2, %80, %cst_30 {dimension_numbers = #tpu.dot_dimension_numbers<[1], [0], [0], [1], [0, 0, 1, 1], [], []>} : vector<32x73xbf16>, vector<73x256xbf16>, vector<32x256xf32> -> vector<32x256xf32>
    %cst_31 = arith.constant 0.000000e+00 : f32
    %82 = vector.broadcast %cst_31 : f32 to vector<32x256xf32>
    %83 = arith.maximumf %81, %82 : vector<32x256xf32>
    %cst_32 = arith.constant 0.000000e+00 : f32
    %84 = vector.broadcast %cst_32 : f32 to vector<32x256xf32>
    %c17_i32_33 = arith.constant 17 : i32
    %85 = tpu.dynamic_rotate %83 by %c17_i32_33 dim 1 : vector<32x256xf32>, i32 -> vector<32x256xf32>
    %cst_34 = arith.constant 0.000000e+00 : f32
    %86 = vector.shape_cast %14 : vector<1x256xi1> to vector<1x256xi1>
    %87 = vector.broadcast %86 : vector<1x256xi1> to vector<32x256xi1>
    %88 = vector.broadcast %cst_34 : f32 to vector<32x256xf32>
    %89 = arith.select %87, %85, %88 : vector<32x256xi1>, vector<32x256xf32>
    %90 = vector.extract_strided_slice %3 {offsets = [0, 0], sizes = [32, 1], strides = [1, 1]} : vector<32x35xf32> to vector<32x1xf32>
    %91 = vector.broadcast %90 : vector<32x1xf32> to vector<32x256xf32>
    %92 = arith.mulf %89, %91 : vector<32x256xf32>
    %93 = arith.addf %84, %92 : vector<32x256xf32>
    %c16_i32_35 = arith.constant 16 : i32
    %94 = tpu.dynamic_rotate %83 by %c16_i32_35 dim 1 : vector<32x256xf32>, i32 -> vector<32x256xf32>
    %cst_36 = arith.constant 0.000000e+00 : f32
    %95 = vector.shape_cast %16 : vector<1x256xi1> to vector<1x256xi1>
    %96 = vector.broadcast %95 : vector<1x256xi1> to vector<32x256xi1>
    %97 = vector.broadcast %cst_36 : f32 to vector<32x256xf32>
    %98 = arith.select %96, %94, %97 : vector<32x256xi1>, vector<32x256xf32>
    %99 = vector.extract_strided_slice %3 {offsets = [0, 1], sizes = [32, 1], strides = [1, 1]} : vector<32x35xf32> to vector<32x1xf32>
    %100 = vector.broadcast %99 : vector<32x1xf32> to vector<32x256xf32>
    %101 = arith.mulf %98, %100 : vector<32x256xf32>
    %102 = arith.addf %93, %101 : vector<32x256xf32>
    %c15_i32_37 = arith.constant 15 : i32
    %103 = tpu.dynamic_rotate %83 by %c15_i32_37 dim 1 : vector<32x256xf32>, i32 -> vector<32x256xf32>
    %cst_38 = arith.constant 0.000000e+00 : f32
    %104 = vector.shape_cast %21 : vector<1x256xi1> to vector<1x256xi1>
    %105 = vector.broadcast %104 : vector<1x256xi1> to vector<32x256xi1>
    %106 = vector.broadcast %cst_38 : f32 to vector<32x256xf32>
    %107 = arith.select %105, %103, %106 : vector<32x256xi1>, vector<32x256xf32>
    %108 = vector.extract_strided_slice %3 {offsets = [0, 2], sizes = [32, 1], strides = [1, 1]} : vector<32x35xf32> to vector<32x1xf32>
    %109 = vector.broadcast %108 : vector<32x1xf32> to vector<32x256xf32>
    %110 = arith.mulf %107, %109 : vector<32x256xf32>
    %111 = arith.addf %102, %110 : vector<32x256xf32>
    %c1_i32_39 = arith.constant 1 : i32
    %112 = tpu.dynamic_rotate %83 by %c1_i32_39 dim 1 : vector<32x256xf32>, i32 -> vector<32x256xf32>
    %cst_40 = arith.constant 0.000000e+00 : f32
    %113 = vector.shape_cast %23 : vector<1x256xi1> to vector<1x256xi1>
    %114 = vector.broadcast %113 : vector<1x256xi1> to vector<32x256xi1>
    %115 = vector.broadcast %cst_40 : f32 to vector<32x256xf32>
    %116 = arith.select %114, %112, %115 : vector<32x256xi1>, vector<32x256xf32>
    %117 = vector.extract_strided_slice %3 {offsets = [0, 3], sizes = [32, 1], strides = [1, 1]} : vector<32x35xf32> to vector<32x1xf32>
    %118 = vector.broadcast %117 : vector<32x1xf32> to vector<32x256xf32>
    %119 = arith.mulf %116, %118 : vector<32x256xf32>
    %120 = arith.addf %111, %119 : vector<32x256xf32>
    %121 = vector.extract_strided_slice %3 {offsets = [0, 4], sizes = [32, 1], strides = [1, 1]} : vector<32x35xf32> to vector<32x1xf32>
    %122 = vector.broadcast %121 : vector<32x1xf32> to vector<32x256xf32>
    %123 = arith.mulf %83, %122 : vector<32x256xf32>
    %124 = arith.addf %120, %123 : vector<32x256xf32>
    %c255_i32_41 = arith.constant 255 : i32
    %125 = tpu.dynamic_rotate %83 by %c255_i32_41 dim 1 : vector<32x256xf32>, i32 -> vector<32x256xf32>
    %cst_42 = arith.constant 0.000000e+00 : f32
    %126 = vector.shape_cast %25 : vector<1x256xi1> to vector<1x256xi1>
    %127 = vector.broadcast %126 : vector<1x256xi1> to vector<32x256xi1>
    %128 = vector.broadcast %cst_42 : f32 to vector<32x256xf32>
    %129 = arith.select %127, %125, %128 : vector<32x256xi1>, vector<32x256xf32>
    %130 = vector.extract_strided_slice %3 {offsets = [0, 5], sizes = [32, 1], strides = [1, 1]} : vector<32x35xf32> to vector<32x1xf32>
    %131 = vector.broadcast %130 : vector<32x1xf32> to vector<32x256xf32>
    %132 = arith.mulf %129, %131 : vector<32x256xf32>
    %133 = arith.addf %124, %132 : vector<32x256xf32>
    %c241_i32_43 = arith.constant 241 : i32
    %134 = tpu.dynamic_rotate %83 by %c241_i32_43 dim 1 : vector<32x256xf32>, i32 -> vector<32x256xf32>
    %cst_44 = arith.constant 0.000000e+00 : f32
    %135 = vector.shape_cast %30 : vector<1x256xi1> to vector<1x256xi1>
    %136 = vector.broadcast %135 : vector<1x256xi1> to vector<32x256xi1>
    %137 = vector.broadcast %cst_44 : f32 to vector<32x256xf32>
    %138 = arith.select %136, %134, %137 : vector<32x256xi1>, vector<32x256xf32>
    %139 = vector.extract_strided_slice %3 {offsets = [0, 6], sizes = [32, 1], strides = [1, 1]} : vector<32x35xf32> to vector<32x1xf32>
    %140 = vector.broadcast %139 : vector<32x1xf32> to vector<32x256xf32>
    %141 = arith.mulf %138, %140 : vector<32x256xf32>
    %142 = arith.addf %133, %141 : vector<32x256xf32>
    %c240_i32_45 = arith.constant 240 : i32
    %143 = tpu.dynamic_rotate %83 by %c240_i32_45 dim 1 : vector<32x256xf32>, i32 -> vector<32x256xf32>
    %cst_46 = arith.constant 0.000000e+00 : f32
    %144 = vector.shape_cast %32 : vector<1x256xi1> to vector<1x256xi1>
    %145 = vector.broadcast %144 : vector<1x256xi1> to vector<32x256xi1>
    %146 = vector.broadcast %cst_46 : f32 to vector<32x256xf32>
    %147 = arith.select %145, %143, %146 : vector<32x256xi1>, vector<32x256xf32>
    %148 = vector.extract_strided_slice %3 {offsets = [0, 7], sizes = [32, 1], strides = [1, 1]} : vector<32x35xf32> to vector<32x1xf32>
    %149 = vector.broadcast %148 : vector<32x1xf32> to vector<32x256xf32>
    %150 = arith.mulf %147, %149 : vector<32x256xf32>
    %151 = arith.addf %142, %150 : vector<32x256xf32>
    %c239_i32_47 = arith.constant 239 : i32
    %152 = tpu.dynamic_rotate %83 by %c239_i32_47 dim 1 : vector<32x256xf32>, i32 -> vector<32x256xf32>
    %cst_48 = arith.constant 0.000000e+00 : f32
    %153 = vector.shape_cast %37 : vector<1x256xi1> to vector<1x256xi1>
    %154 = vector.broadcast %153 : vector<1x256xi1> to vector<32x256xi1>
    %155 = vector.broadcast %cst_48 : f32 to vector<32x256xf32>
    %156 = arith.select %154, %152, %155 : vector<32x256xi1>, vector<32x256xf32>
    %157 = vector.extract_strided_slice %3 {offsets = [0, 8], sizes = [32, 1], strides = [1, 1]} : vector<32x35xf32> to vector<32x1xf32>
    %158 = vector.broadcast %157 : vector<32x1xf32> to vector<32x256xf32>
    %159 = arith.mulf %156, %158 : vector<32x256xf32>
    %160 = arith.addf %151, %159 : vector<32x256xf32>
    %161 = vector.extract_strided_slice %3 {offsets = [0, 9], sizes = [32, 1], strides = [1, 1]} : vector<32x35xf32> to vector<32x1xf32>
    %162 = vector.broadcast %161 : vector<32x1xf32> to vector<32x256xf32>
    %163 = arith.addf %160, %162 : vector<32x256xf32>
    %cst_49 = arith.constant 0.000000e+00 : f32
    %164 = vector.broadcast %cst_49 : f32 to vector<32x256xf32>
    %165 = arith.maximumf %163, %164 : vector<32x256xf32>
    %166 = vector.extract_strided_slice %3 {offsets = [0, 11], sizes = [32, 8], strides = [1, 1]} : vector<32x35xf32> to vector<32x8xf32>
    %167 = vector.extract_strided_slice %3 {offsets = [0, 19], sizes = [32, 8], strides = [1, 1]} : vector<32x35xf32> to vector<32x8xf32>
    %168 = vector.extract_strided_slice %3 {offsets = [0, 10], sizes = [32, 1], strides = [1, 1]} : vector<32x35xf32> to vector<32x1xf32>
    %169 = vector.extract_strided_slice %3 {offsets = [0, 27], sizes = [1, 8], strides = [1, 1]} : vector<32x35xf32> to vector<1x8xf32>
    %170 = vector.extract_strided_slice %4 {offsets = [0, 0], sizes = [8, 32], strides = [1, 1]} : vector<8x33xf32> to vector<8x32xf32>
    %171 = vector.extract_strided_slice %4 {offsets = [0, 32], sizes = [8, 1], strides = [1, 1]} : vector<8x33xf32> to vector<8x1xf32>
    %cst_50 = arith.constant dense<0.000000e+00> : vector<32xf32>
    %172 = vector.multi_reduction <add>, %165, %cst_50 [1] : vector<32x256xf32> to vector<32xf32>
    %173 = vector.shape_cast %172 : vector<32xf32> to vector<32x1xf32>
    %cst_51 = arith.constant 2.560000e+02 : f32
    %174 = vector.broadcast %cst_51 : f32 to vector<32x1xf32>
    %175 = arith.divf %173, %174 : vector<32x1xf32>
    %176 = vector.broadcast %175 : vector<32x1xf32> to vector<32x8xf32>
    %177 = arith.mulf %166, %176 : vector<32x8xf32>
    %cst_52 = arith.constant dense<0.000000e+00> : vector<8xf32>
    %178 = vector.multi_reduction <add>, %177, %cst_52 [0] : vector<32x8xf32> to vector<8xf32>
    %179 = vector.shape_cast %178 : vector<8xf32> to vector<1x8xf32>
    %180 = arith.addf %179, %169 : vector<1x8xf32>
    %cst_53 = arith.constant 0.000000e+00 : f32
    %181 = vector.broadcast %cst_53 : f32 to vector<1x8xf32>
    %182 = arith.maximumf %180, %181 : vector<1x8xf32>
    %183 = vector.broadcast %182 : vector<1x8xf32> to vector<32x8xf32>
    %184 = arith.mulf %167, %183 : vector<32x8xf32>
    %cst_54 = arith.constant dense<0.000000e+00> : vector<32xf32>
    %185 = vector.multi_reduction <add>, %184, %cst_54 [1] : vector<32x8xf32> to vector<32xf32>
    %186 = vector.shape_cast %185 : vector<32xf32> to vector<32x1xf32>
    %187 = arith.addf %186, %168 : vector<32x1xf32>
    %cst_55 = arith.constant 0.166666672 : f32
    %188 = vector.broadcast %cst_55 : f32 to vector<32x1xf32>
    %189 = arith.mulf %187, %188 : vector<32x1xf32>
    %cst_56 = arith.constant 5.000000e-01 : f32
    %190 = vector.broadcast %cst_56 : f32 to vector<32x1xf32>
    %191 = arith.addf %189, %190 : vector<32x1xf32>
    %cst_57 = arith.constant 0.000000e+00 : f32
    %cst_58 = arith.constant 1.000000e+00 : f32
    %192 = vector.broadcast %cst_57 : f32 to vector<32x1xf32>
    %193 = arith.maximumf %192, %191 : vector<32x1xf32>
    %194 = vector.broadcast %cst_58 : f32 to vector<32x1xf32>
    %195 = arith.minimumf %194, %193 : vector<32x1xf32>
    %196 = tpu.transpose %195, [1, 0] : vector<32x1xf32> -> vector<1x32xf32>
    %197 = vector.broadcast %196 : vector<1x32xf32> to vector<8x32xf32>
    %198 = arith.mulf %170, %197 : vector<8x32xf32>
    %199 = arith.truncf %198 : vector<8x32xf32> to vector<8x32xbf16>
    %200 = arith.truncf %165 : vector<32x256xf32> to vector<32x256xbf16>
    %cst_59 = arith.constant dense<0.000000e+00> : vector<8x256xf32>
    %201 = tpu.matmul %199, %200, %cst_59 {dimension_numbers = #tpu.dot_dimension_numbers<[1], [0], [0], [1], [0, 0, 1, 1], [], []>} : vector<8x32xbf16>, vector<32x256xbf16>, vector<8x256xf32> -> vector<8x256xf32>
    %202 = vector.broadcast %171 : vector<8x1xf32> to vector<8x256xf32>
    %203 = arith.addf %201, %202 : vector<8x256xf32>
    %204 = arith.addf %1, %203 : vector<8x256xf32>
    %c0_60 = arith.constant 0 : index
    %c0_61 = arith.constant 0 : index
    %c0_62 = arith.constant 0 : index
    %205 = vector.load %arg5[%c0_60, %c0_61, %c0_62] : memref<1x8x256xf32, #tpu.memory_space<vmem>>, vector<1x8x256xf32>
    %206 = vector.shape_cast %205 : vector<1x8x256xf32> to vector<8x256xf32>
    %207 = vector.shape_cast %204 : vector<8x256xf32> to vector<1x8x256xf32>
    tpu.vector_store %arg5[%c0_60, %c0_61, %c0_62], %207 {strides = array<i32>} : memref<1x8x256xf32, #tpu.memory_space<vmem>>, vector<1x8x256xf32>,
    return
  }
  func.func @transform_0(%arg0: i32) -> (i32, i32, i32) {
    %c0_i32 = arith.constant 0 : i32
    %c0_i32_0 = arith.constant 0 : i32
    %c0_i32_1 = arith.constant 0 : i32
    return %arg0, %c0_i32, %c0_i32_0 : i32, i32, i32
  }
  func.func @transform_1(%arg0: i32) -> (i32, i32) {
    %c0_i32 = arith.constant 0 : i32
    %c0_i32_0 = arith.constant 0 : i32
    %c0_i32_1 = arith.constant 0 : i32
    return %c0_i32, %c0_i32_0 : i32, i32
  }
  func.func @transform_2(%arg0: i32) -> (i32, i32) {
    %c0_i32 = arith.constant 0 : i32
    %c0_i32_0 = arith.constant 0 : i32
    %c0_i32_1 = arith.constant 0 : i32
    return %c0_i32, %c0_i32_0 : i32, i32
  }
  func.func @transform_3(%arg0: i32) -> (i32, i32) {
    %c0_i32 = arith.constant 0 : i32
    %c0_i32_0 = arith.constant 0 : i32
    %c0_i32_1 = arith.constant 0 : i32
    return %c0_i32, %c0_i32_0 : i32, i32
  }
  func.func @transform_4(%arg0: i32) -> (i32, i32, i32) {
    %c0_i32 = arith.constant 0 : i32
    %c0_i32_0 = arith.constant 0 : i32
    %c0_i32_1 = arith.constant 0 : i32
    return %arg0, %c0_i32, %c0_i32_0 : i32, i32, i32
  }
}

</mosaic_0001>

<llo_original>
// kernel: tpu_custom_call.1
$region0: #{tpu_custom_call.1}
  #allocation0 [shape = 'u32[]', space=smem, size = 0x4, offset = 0x4, fixed_abs, tag = 'smem constant byte address 0x4 - core index']
  #allocation1 [shape = 'u32[144,128]{1,0:T(1,128)}', space=vmem, size = 0x12000, scoped, tag = 'internal scratch']
  %s0 = inlined_call_operand.hbm [shape: f32[2,8,256], index: 0, kind: input, shape index: {}]
  %s1 = inlined_call_operand.hbm [shape: bf16[32,73], index: 1, kind: input, shape index: {}]
  %s2 = inlined_call_operand.hbm [shape: f32[32,35], index: 2, kind: input, shape index: {}]
  %s3 = inlined_call_operand.hbm [shape: f32[8,33], index: 3, kind: input, shape index: {}]
  %s4 = inlined_call_operand.hbm [shape: f32[2,8,256], index: 4, kind: output, shape index: {}]
  %s5 = sld [smem:[#allocation0]]
  $region65: #{tpu_custom_call.1} parent=0
    _
  %s7 = ssub.s32 1, %s5
  %s8 = scalar_select 0, %s7, %s5
  $region1: #{tpu_custom_call.1} parent=0
    #allocation2 [shape = 'u8[16384]{0}', space=vmem, size = 0x4000, scoped, tag = 'input window, operand 0']
    #allocation3 [shape = 's32[2]{0}', space=sflag, size = 0x8, scoped, tag = 'scoped memory for tpu_custom_call.1']
    #allocation4 [shape = 's32[2]{0}', space=sflag, size = 0x8, scoped, tag = 'scoped memory for tpu_custom_call.1']
    #allocation5 [shape = 'u8[8192]{0}', space=vmem, size = 0x2000, scoped, tag = 'input window, operand 1, single buffered']
    #allocation6 [shape = 's32[1]{0}', space=sflag, size = 0x4, scoped, tag = 'scoped memory for tpu_custom_call.1']
    #allocation7 [shape = 'u8[16384]{0}', space=vmem, size = 0x4000, scoped, tag = 'input window, operand 2, single buffered']
    #allocation8 [shape = 'u8[4096]{0}', space=vmem, size = 0x1000, scoped, tag = 'input window, operand 3, single buffered']
    #allocation9 [shape = 's32[1]{0}', space=sflag, size = 0x4, scoped, tag = 'scoped memory for tpu_custom_call.1']
    #allocation10 [shape = 'u8[16384]{0}', space=vmem, size = 0x4000, scoped, tag = 'output window, operand 0']
    %9 = vsyncpa [#allocation3], 0
    %s10 = scalar_lea.sflag [#allocation3], 1
    %11 = vsyncpa %s10, 0
    %12 = vsyncpa [#allocation6], 0
    %13 = vsyncpa [#allocation9], 0
    %14 = vsyncpa [#allocation4], 0
    %s15 = scalar_lea.sflag [#allocation4], 1
    %16 = vsyncpa %s15, 0
    loop: start=0, step=1, limit=4
    $region2: #{tpu_custom_call.1} parent=1 // loop_pre_header
      _
    $region3: #{tpu_custom_call.1} parent=1 // loop_header
      %s18 = sphi 0, %s22
      %p19 = scmp.ge.s32.totalorder %s18, 4
      %s28 = sphi 0, %s30
      %s31 = sphi 0, %s28
      %s32 = sphi 0, %s31
      %s48 = sphi 0, %s32
      %s52 = sphi 0, %s52
      %s54 = sphi 0, %s52
      %s55 = sphi 0, %s54
      %s69 = sphi 0, %s55
      %s73 = sphi 0, %s73
      %s75 = sphi 0, %s73
      %s76 = sphi 0, %s75
      %s90 = sphi 0, %s76
      %s94 = sphi 0, %s94
      %s96 = sphi 0, %s94
      %s97 = sphi 0, %s96
      %s111 = sphi 0, %s97
      %s117 = sphi 0, %s119
      %s120 = sphi 0, %s117
      %s121 = sphi 0, %s120
      %s137 = sphi 0, %s121
    $region4: #{tpu_custom_call.1} parent=1 // loop_header_branch
      %21 = sbr.rel (%p19) target = $region8
    $region5: #{tpu_custom_call.1} parent=1 // loop_body
      %s23 = ssub.s32 %s18, 1
      %s24 = ssub.s32 %s18, 2
      %s25 = sadd.s32 %s18, 1
      %s26 = ssub.s32 %s18, %s25
      %p27 = scmp.eq.s32.totalorder %s26, 0
      %s29 = sadd.s32 %s28, 1
      %s30 = scalar_select %p27, %s28, %s29
      %p33 = pneg %p27
      %p34 = scmp.eq.s32.totalorder %s18, 1
      %p35 = por %p33, %p34
      %p36 = scmp.ne.s32.totalorder %s28, %s31
      %p37 = scmp.eq.s32.totalorder %s18, 0
      %p38 = por %p36, %p37
      %p39 = scmp.ne.s32.totalorder %s28, %s31
      %p40 = scmp.eq.s32.totalorder %s23, 1
      %p41 = por %p39, %p40
      %p42 = scmp.ne.s32.totalorder %s31, %s32
      %p43 = scmp.eq.s32.totalorder %s23, 0
      %p44 = por %p42, %p43
      %p45 = scmp.ne.s32.totalorder %s31, %s32
      %p46 = scmp.eq.s32.totalorder %s24, 1
      %p47 = por %p45, %p46
      %p49 = scmp.ne.s32.totalorder %s32, %s48
      %p50 = scmp.eq.s32.totalorder %s24, 0
      %p51 = por %p49, %p50
      %s53 = sadd.s32 %s52, 1
      %p56 = scmp.eq.s32.totalorder %s18, 1
      %p57 = scmp.ne.s32.totalorder %s52, %s54
      %p58 = scmp.eq.s32.totalorder %s18, 0
      %p59 = por %p57, %p58
      %p60 = scmp.ne.s32.totalorder %s52, %s54
      %p61 = scmp.eq.s32.totalorder %s23, 1
      %p62 = por %p60, %p61
      %p63 = scmp.ne.s32.totalorder %s54, %s55
      %p64 = scmp.eq.s32.totalorder %s23, 0
      %p65 = por %p63, %p64
      %p66 = scmp.ne.s32.totalorder %s54, %s55
      %p67 = scmp.eq.s32.totalorder %s24, 1
      %p68 = por %p66, %p67
      %p70 = scmp.ne.s32.totalorder %s55, %s69
      %p71 = scmp.eq.s32.totalorder %s24, 0
      %p72 = por %p70, %p71
      %s74 = sadd.s32 %s73, 1
      %p77 = scmp.eq.s32.totalorder %s18, 1
      %p78 = scmp.ne.s32.totalorder %s73, %s75
      %p79 = scmp.eq.s32.totalorder %s18, 0
      %p80 = por %p78, %p79
      %p81 = scmp.ne.s32.totalorder %s73, %s75
      %p82 = scmp.eq.s32.totalorder %s23, 1
      %p83 = por %p81, %p82
      %p84 = scmp.ne.s32.totalorder %s75, %s76
      %p85 = scmp.eq.s32.totalorder %s23, 0
      %p86 = por %p84, %p85
      %p87 = scmp.ne.s32.totalorder %s75, %s76
      %p88 = scmp.eq.s32.totalorder %s24, 1
      %p89 = por %p87, %p88
      %p91 = scmp.ne.s32.totalorder %s76, %s90
      %p92 = scmp.eq.s32.totalorder %s24, 0
      %p93 = por %p91, %p92
      %s95 = sadd.s32 %s94, 1
      %p98 = scmp.eq.s32.totalorder %s18, 1
      %p99 = scmp.ne.s32.totalorder %s94, %s96
      %p100 = scmp.eq.s32.totalorder %s18, 0
      %p101 = por %p99, %p100
      %p102 = scmp.ne.s32.totalorder %s94, %s96
      %p103 = scmp.eq.s32.totalorder %s23, 1
      %p104 = por %p102, %p103
      %p105 = scmp.ne.s32.totalorder %s96, %s97
      %p106 = scmp.eq.s32.totalorder %s23, 0
      %p107 = por %p105, %p106
      %p108 = scmp.ne.s32.totalorder %s96, %s97
      %p109 = scmp.eq.s32.totalorder %s24, 1
      %p110 = por %p108, %p109
      %p112 = scmp.ne.s32.totalorder %s97, %s111
      %p113 = scmp.eq.s32.totalorder %s24, 0
      %p114 = por %p112, %p113
      %s115 = ssub.s32 %s18, %s25
      %p116 = scmp.eq.s32.totalorder %s115, 0
      %s118 = sadd.s32 %s117, 1
      %s119 = scalar_select %p116, %s117, %s118
      %p122 = pneg %p116
      %p123 = scmp.eq.s32.totalorder %s18, 1
      %p124 = por %p122, %p123
      %p125 = scmp.ne.s32.totalorder %s117, %s120
      %p126 = scmp.eq.s32.totalorder %s18, 0
      %p127 = por %p125, %p126
      %p128 = scmp.ne.s32.totalorder %s117, %s120
      %p129 = scmp.eq.s32.totalorder %s23, 1
      %p130 = por %p128, %p129
      %p131 = scmp.ne.s32.totalorder %s120, %s121
      %p132 = scmp.eq.s32.totalorder %s23, 0
      %p133 = por %p131, %p132
      %p134 = scmp.ne.s32.totalorder %s120, %s121
      %p135 = scmp.eq.s32.totalorder %s24, 1
      %p136 = por %p134, %p135
      %p138 = scmp.ne.s32.totalorder %s121, %s137
      %p139 = scmp.eq.s32.totalorder %s24, 0
      %p140 = por %p138, %p139
      %p141 = scmp.le.s32.totalorder 1, %s18
      %p142 = scmp.lt.s32.totalorder %s18, 3
      %p143 = pnand %p141, %p142
      %p144 = pneg %p143
      // Predicated region
      $region9: #{tpu_custom_call.1} parent=5 // pred_check
        _
      $region10: #{tpu_custom_call.1} parent=5 // pred_check_branch
        %146 = sbr.rel (%p143) target = $region12
      $region11: #{tpu_custom_call.1} parent=5 // pred_region
        %s147 = ssub.s32 %s18, 1
        // Predicated region
        $region13: #{tpu_custom_call.1} parent=11 // pred_check
          %p148 = pneg %p65
        $region14: #{tpu_custom_call.1} parent=11 // pred_check_branch
          %150 = sbr.rel (%p148) target = $region16
        $region15: #{tpu_custom_call.1} parent=11 // pred_region
          %s152 = ssub.s32 256, 256
          %153 = vsyncadd [#allocation6], %s152
          %s154 = sshll.u32 [#allocation5], 4
          %s155 = int_to_ptr.vmem [resolvable:$true] %s154
          %160 = dma.hbm_to_vmem [thread:$0]  %s1, 256, %s155, [#allocation6], 64, 64, 4
        $region16: #{tpu_custom_call.1} parent=11 // pred_fallthru
          _
        // Predicated region
        $region17: #{tpu_custom_call.1} parent=11 // pred_check
          %p161 = pneg %p86
        $region18: #{tpu_custom_call.1} parent=11 // pred_check_branch
          %163 = sbr.rel (%p161) target = $region20
        $region19: #{tpu_custom_call.1} parent=11 // pred_region
          %s165 = ssub.s32 512, 512
          %166 = vsyncadd [#allocation6], %s165
          %s167 = sshll.u32 [#allocation7], 4
          %s168 = int_to_ptr.vmem [resolvable:$true] %s167
          %173 = dma.hbm_to_vmem [thread:$0]  %s2, 512, %s168, [#allocation6], 128, 128, 8
        $region20: #{tpu_custom_call.1} parent=11 // pred_fallthru
          _
        // Predicated region
        $region21: #{tpu_custom_call.1} parent=11 // pred_check
          %p174 = pneg %p107
        $region22: #{tpu_custom_call.1} parent=11 // pred_check_branch
          %176 = sbr.rel (%p174) target = $region24
        $region23: #{tpu_custom_call.1} parent=11 // pred_region
          %s178 = ssub.s32 128, 128
          %179 = vsyncadd [#allocation9], %s178
          %s181 = sshll.u32 [#allocation8], 4
          %s182 = int_to_ptr.vmem [resolvable:$true] %s181
          %184 = dma.hbm_to_vmem [thread:$0]  %s3, 128, %s182, [#allocation9]
        $region24: #{tpu_custom_call.1} parent=11 // pred_fallthru
          _
      $region12: #{tpu_custom_call.1} parent=5 // pred_fallthru
        _
      %p185 = scmp.lt.s32.totalorder %s18, 2
      // Predicated region
      $region25: #{tpu_custom_call.1} parent=5 // pred_check
        %p186 = pneg %p185
      $region26: #{tpu_custom_call.1} parent=5 // pred_check_branch
        %188 = sbr.rel (%p186) target = $region28
      $region27: #{tpu_custom_call.1} parent=5 // pred_region
        // Predicated region
        $region29: #{tpu_custom_call.1} parent=27 // pred_check
          %p189 = pneg %p38
        $region30: #{tpu_custom_call.1} parent=27 // pred_check_branch
          %191 = sbr.rel (%p189) target = $region32
        $region31: #{tpu_custom_call.1} parent=27 // pred_region
          %s192 = sand.u32 %s28, 1
          %s193 = scalar_lea.sflag [#allocation3], %s192
          %s194 = sand.u32 %s28, 1
          %s195 = smul.addr %s194, 16
          %s196 = scalar_lea.vmem [#allocation2], %s195
          %s198 = ssub.s32 256, 256
          %199 = vsyncadd %s193, %s198
          %s200 = smul.addr %s18, 2
          %s201 = smul.addr %s200, 128
          %s202 = scalar_lea.hbm %s0, %s201
          %s204 = sshll.u32 %s196, 4
          %s205 = int_to_ptr.vmem [resolvable:$true] %s204
          %207 = dma.hbm_to_vmem [thread:$0]  %s202, 256, %s205, %s193
        $region32: #{tpu_custom_call.1} parent=27 // pred_fallthru
          _
      $region28: #{tpu_custom_call.1} parent=5 // pred_fallthru
        _
      %p208 = scmp.le.s32.totalorder 1, %s18
      %p209 = scmp.lt.s32.totalorder %s18, 3
      %p210 = pnand %p208, %p209
      %p211 = pneg %p210
      // Predicated region
      $region33: #{tpu_custom_call.1} parent=5 // pred_check
        _
      $region34: #{tpu_custom_call.1} parent=5 // pred_check_branch
        %213 = sbr.rel (%p210) target = $region36
      $region35: #{tpu_custom_call.1} parent=5 // pred_region
        %s214 = ssub.s32 %s18, 1
        %s215 = sand.u32 %s31, 1
        %s216 = scalar_lea.sflag [#allocation3], %s215
        %s217 = sand.u32 %s31, 1
        %s218 = smul.addr %s217, 16
        %s219 = scalar_lea.vmem [#allocation2], %s218
        // Predicated region
        $region37: #{tpu_custom_call.1} parent=35 // pred_check
          %p220 = pneg %p44
        $region38: #{tpu_custom_call.1} parent=35 // pred_check_branch
          %222 = sbr.rel (%p220) target = $region40
        $region39: #{tpu_custom_call.1} parent=35 // pred_region
          %223 = dma.done %s216, 256
        $region40: #{tpu_custom_call.1} parent=35 // pred_fallthru
          _
        // Predicated region
        $region41: #{tpu_custom_call.1} parent=35 // pred_check
          %p224 = pneg %p65
        $region42: #{tpu_custom_call.1} parent=35 // pred_check_branch
          %226 = sbr.rel (%p224) target = $region44
        $region43: #{tpu_custom_call.1} parent=35 // pred_region
          %227 = dma.done [#allocation6], 256
        $region44: #{tpu_custom_call.1} parent=35 // pred_fallthru
          _
        // Predicated region
        $region45: #{tpu_custom_call.1} parent=35 // pred_check
          %p228 = pneg %p86
        $region46: #{tpu_custom_call.1} parent=35 // pred_check_branch
          %230 = sbr.rel (%p228) target = $region48
        $region47: #{tpu_custom_call.1} parent=35 // pred_region
          %231 = dma.done [#allocation6], 512
        $region48: #{tpu_custom_call.1} parent=35 // pred_fallthru
          _
        // Predicated region
        $region49: #{tpu_custom_call.1} parent=35 // pred_check
          %p232 = pneg %p107
        $region50: #{tpu_custom_call.1} parent=35 // pred_check_branch
          %234 = sbr.rel (%p232) target = $region52
        $region51: #{tpu_custom_call.1} parent=35 // pred_region
          %235 = dma.done [#allocation9], 128
        $region52: #{tpu_custom_call.1} parent=35 // pred_fallthru
          _
        %s236 = sand.u32 %s31, 1
        %s237 = scalar_lea.sflag [#allocation3], %s236
        %s238 = sand.u32 %s31, 1
        %s239 = smul.addr %s238, 16
        %s240 = scalar_lea.vmem [#allocation2], %s239
        %p241 = pneg %p44
        %p242 = pneg %p41
        %p243 = pneg %p65
        %p244 = pneg %p62
        %p245 = pneg %p86
        %p246 = pneg %p83
        %p247 = pneg %p107
        %p248 = pneg %p104
        %p249 = pneg %p133
        %p250 = pneg %p130
        %s251 = sand.u32 %s120, 1
        %s252 = scalar_lea.sflag [#allocation4], %s251
        %s253 = sand.u32 %s120, 1
        %s254 = smul.addr %s253, 16
        %s255 = scalar_lea.vmem [#allocation10], %s254
        %v257 = vld [vmem:[%s219] sm:$0xff]
        %v258 = vld [vmem:[%s219 + $0x8] sm:$0xff]
        %v259 = vld [vmem:[#allocation5] sm:$0xf]
        %v260 = vld [vmem:[#allocation5 + $0x4] sm:$0xf]
        %v261 = vld [vmem:[#allocation5 + $0x8] sm:$0xf]
        %v262 = vld [vmem:[#allocation5 + $0xc] sm:$0xf]
        %v263 = vld [vmem:[#allocation7] sm:$0xff]
        %v264 = vld [vmem:[#allocation7 + $0x8] sm:$0xff]
        %v265 = vld [vmem:[#allocation7 + $0x10] sm:$0xff]
        %v266 = vld [vmem:[#allocation7 + $0x18] sm:$0xff]
        %v267 = vld [vmem:[#allocation8] sm:$0xff]
        %v268 = vlaneseq
        %v269 = vand.u32 %v268, 127
        %v270 = vadd.s32 %v269, 128
        %v271 = vand.u32 %v269, 255
        %v272 = vand.u32 %v270, 255
        %v273 = vand.u32 %v269, 15
        %v274 = vand.u32 %v270, 15
        %vm275 = vcmp.ge.s32.totalorder %v271, 16
        %vm276 = vcmp.ge.s32.totalorder %v272, 16
        %vm277 = vcmp.ge.s32.totalorder %v273, 1
        %vm278 = vcmp.ge.s32.totalorder %v274, 1
        %vm279 = vmand %vm275, %vm277
        %vm280 = vmand %vm276, %vm278
        %vm281 = vcmp.lt.s32.totalorder %v273, 15
        %vm282 = vcmp.lt.s32.totalorder %v274, 15
        %vm283 = vmand %vm275, %vm281
        %vm284 = vmand %vm276, %vm282
        %vm285 = vcmp.lt.s32.totalorder %v271, 240
        %vm286 = vcmp.lt.s32.totalorder %v272, 240
        %vm287 = vmand %vm285, %vm277
        %vm288 = vmand %vm286, %vm278
        %vm289 = vmand %vm285, %vm281
        %vm290 = vmand %vm286, %vm282
        %291 = vrot.lane.b32.xlu0 %v257, 17
        %v292 = vpop.permute.xlu0 %291
        %293 = vrot.lane.b32.xlu0 %v258, 17
        %v294 = vpop.permute.xlu0 %293
        %vm295 = vcmp.lt.s32.totalorder %v269, 17
        %v296 = vsel %vm295, %v292, %v294
        %v297 = vsel %vm295, %v294, %v292
        %v298 = vsel %vm279, 1, 0
        %v299 = vsel %vm280, 1, 0
        %vm300 = vcmp.eq.s32.totalorder %v298, 1
        %vm301 = vcmp.eq.s32.totalorder %v299, 1
        %v302 = vsel %vm300, %v297, 0.0
        %v303 = vsel %vm301, %v296, 0.0
        %304 = vrot.lane.b32.xlu0 %v257, 16
        %v305 = vpop.permute.xlu0 %304
        %306 = vrot.lane.b32.xlu0 %v258, 16
        %v307 = vpop.permute.xlu0 %306
        %vm308 = vcmp.lt.s32.totalorder %v269, 16
        %v309 = vsel %vm308, %v305, %v307
        %v310 = vsel %vm308, %v307, %v305
        %v311 = vsel %vm275, 1, 0
        %v312 = vsel %vm276, 1, 0
        %vm313 = vcmp.eq.s32.totalorder %v311, 1
        %vm314 = vcmp.eq.s32.totalorder %v312, 1
        %v315 = vsel %vm313, %v310, 0.0
        %v316 = vsel %vm314, %v309, 0.0
        %317 = vrot.lane.b32.xlu0 %v257, 15
        %v318 = vpop.permute.xlu0 %317
        %319 = vrot.lane.b32.xlu0 %v258, 15
        %v320 = vpop.permute.xlu0 %319
        %vm321 = vcmp.lt.s32.totalorder %v269, 15
        %v322 = vsel %vm321, %v318, %v320
        %v323 = vsel %vm321, %v320, %v318
        %v324 = vsel %vm283, 1, 0
        %v325 = vsel %vm284, 1, 0
        %vm326 = vcmp.eq.s32.totalorder %v324, 1
        %vm327 = vcmp.eq.s32.totalorder %v325, 1
        %v328 = vsel %vm326, %v323, 0.0
        %v329 = vsel %vm327, %v322, 0.0
        %330 = vrot.lane.b32.xlu0 %v257, 1
        %v331 = vpop.permute.xlu0 %330
        %332 = vrot.lane.b32.xlu0 %v258, 1
        %v333 = vpop.permute.xlu0 %332
        %vm334 = vcmp.lt.s32.totalorder %v269, 1
        %v335 = vsel %vm334, %v331, %v333
        %v336 = vsel %vm334, %v333, %v331
        %v337 = vsel %vm277, 1, 0
        %v338 = vsel %vm278, 1, 0
        %vm339 = vcmp.eq.s32.totalorder %v337, 1
        %vm340 = vcmp.eq.s32.totalorder %v338, 1
        %v341 = vsel %vm339, %v336, 0.0
        %v342 = vsel %vm340, %v335, 0.0
        %343 = vrot.lane.b32.xlu0 %v257, 127
        %v344 = vpop.permute.xlu0 %343
        %345 = vrot.lane.b32.xlu0 %v258, 127
        %v346 = vpop.permute.xlu0 %345
        %vm347 = vcmp.lt.s32.totalorder %v269, 127
        %v348 = vsel %vm347, %v344, %v346
        %v349 = vsel %vm347, %v346, %v344
        %v350 = vsel %vm281, 1, 0
        %v351 = vsel %vm282, 1, 0
        %vm352 = vcmp.eq.s32.totalorder %v350, 1
        %vm353 = vcmp.eq.s32.totalorder %v351, 1
        %v354 = vsel %vm352, %v348, 0.0
        %v355 = vsel %vm353, %v349, 0.0
        %356 = vrot.lane.b32.xlu0 %v257, 113
        %v357 = vpop.permute.xlu0 %356
        %358 = vrot.lane.b32.xlu0 %v258, 113
        %v359 = vpop.permute.xlu0 %358
        %vm360 = vcmp.lt.s32.totalorder %v269, 113
        %v361 = vsel %vm360, %v357, %v359
        %v362 = vsel %vm360, %v359, %v357
        %v363 = vsel %vm287, 1, 0
        %v364 = vsel %vm288, 1, 0
        %vm365 = vcmp.eq.s32.totalorder %v363, 1
        %vm366 = vcmp.eq.s32.totalorder %v364, 1
        %v367 = vsel %vm365, %v361, 0.0
        %v368 = vsel %vm366, %v362, 0.0
        %369 = vrot.lane.b32.xlu0 %v257, 112
        %v370 = vpop.permute.xlu0 %369
        %371 = vrot.lane.b32.xlu0 %v258, 112
        %v372 = vpop.permute.xlu0 %371
        %vm373 = vcmp.lt.s32.totalorder %v269, 112
        %v374 = vsel %vm373, %v370, %v372
        %v375 = vsel %vm373, %v372, %v370
        %v376 = vsel %vm285, 1, 0
        %v377 = vsel %vm286, 1, 0
        %vm378 = vcmp.eq.s32.totalorder %v376, 1
        %vm379 = vcmp.eq.s32.totalorder %v377, 1
        %v380 = vsel %vm378, %v374, 0.0
        %v381 = vsel %vm379, %v375, 0.0
        %382 = vrot.lane.b32.xlu0 %v257, 111
        %v383 = vpop.permute.xlu0 %382
        %384 = vrot.lane.b32.xlu0 %v258, 111
        %v385 = vpop.permute.xlu0 %384
        %vm386 = vcmp.lt.s32.totalorder %v269, 111
        %v387 = vsel %vm386, %v383, %v385
        %v388 = vsel %vm386, %v385, %v383
        %v389 = vsel %vm289, 1, 0
        %v390 = vsel %vm290, 1, 0
        %vm391 = vcmp.eq.s32.totalorder %v389, 1
        %vm392 = vcmp.eq.s32.totalorder %v390, 1
        %v393 = vsel %vm391, %v387, 0.0
        %v394 = vsel %vm392, %v388, 0.0
        %v395 = vpack.c.bf16 %v315, %v302
        %v396 = vpack.c.bf16 %v316, %v303
        %v397 = vpack.c.bf16 %v341, %v328
        %v398 = vpack.c.bf16 %v342, %v329
        %v399 = vpack.c.bf16 %v354, %v257
        %v400 = vpack.c.bf16 %v355, %v258
        %v401 = vpack.c.bf16 %v380, %v367
        %v402 = vpack.c.bf16 %v381, %v368
        %v403 = vpack.c.bf16 1.0, %v393
        %v404 = vpack.c.bf16 1.0, %v394
        %v409 = vunpack.c.l.b16 %v259
        %v410 = vunpack.c.l.b16 %v260
        %v411 = vunpack.c.l.b16 %v261
        %v412 = vunpack.c.l.b16 %v262
        %v413 = vpack.c.b16 %v410, %v409
        %v414 = vpack.c.b16 %v412, %v411
        %vm415 = vcmask 596992
        %v417 = vsel %vm415, %v413, 0
        %v420 = vsel %vm415, %v414, 0
        %vm422 = vcmask 1043456
        %vm423 = vcmask 1044480
        %v424 = vsel %vm422, 4294967295, 65535
        %v425 = vsel %vm423, %v424, 0
        %v427 = vand.u32 %v403, %v425
        %v430 = vand.u32 %v404, %v425
        %432 = vmatprep.subr.bf16.mxu0 0
        %433 = vmatpush1.bf16.msra.mxu0 0
        %434 = vmatprep.subr.bf16.mxu0 0
        %435 = vmatpush1.bf16.msra.mxu0 0
        %436 = vmatprep.subr.bf16.mxu0 0
        %437 = vmatpush1.bf16.msra.mxu0 0
        %438 = vmatprep.subr.bf16.mxu0 %v430
        %439 = vmatpush1.bf16.msra.mxu0 %v427
        %440 = vmatprep.subr.bf16.mxu0 %v402
        %441 = vmatpush1.bf16.msra.mxu0 %v401
        %442 = vmatprep.subr.bf16.mxu0 %v400
        %443 = vmatpush1.bf16.msra.mxu0 %v399
        %444 = vmatprep.subr.bf16.mxu0 %v398
        %445 = vmatpush1.bf16.msra.mxu0 %v397
        %446 = vmatprep.subr.bf16.mxu0 %v396
        %447 = vmatpush1.bf16.msra.mxu0 %v395
        %448 = vmatprep.subr.bf16.mxu0 0
        %449 = vmatpush2.bf16.msra.mxu0 0
        %450 = vmatprep.subr.bf16.mxu0 0
        %451 = vmatpush2.bf16.msra.mxu0 0
        %452 = vmatprep.subr.bf16.mxu0 0
        %453 = vmatpush2.bf16.msra.mxu0 0
        %454 = vmatprep.subr.bf16.mxu0 0
        %455 = vmatpush2.bf16.msra.mxu0 0
        %456 = vmatprep.subr.bf16.mxu0 0
        %457 = vmatpush2.bf16.msra.mxu0 0
        %458 = vmatprep.subr.bf16.mxu0 0
        %459 = vmatpush2.bf16.msra.mxu0 0
        %460 = vmatprep.subr.bf16.mxu0 0
        %461 = vmatpush2.bf16.msra.mxu0 0
        %462 = vmatprep.subr.bf16.mxu0 0
        %463 = vmatpush2.bf16.msra.mxu0 0
        %464 = vmatprep.mubr.bf16.mxu0 0
        %465 = vmatmul.mubr.bf16.gmra.mxu0 %v417
        %v466 = vpop.f32.mrf.mxu0
        %v467 = vadd.f32 0.0, %v466
        %v468 = vpop.f32.mrf.mxu0
        %v469 = vadd.f32 0.0, %v468
        %v470 = vpop.f32.mrf.mxu0
        %v471 = vadd.f32 0.0, %v470
        %v472 = vpop.f32.mrf.mxu0
        %v473 = vadd.f32 0.0, %v472
        %474 = vmatprep.mubr.bf16.mxu0 0
        %475 = vmatmul.mubr.bf16.gmra.mxu0 %v420
        %v476 = vpop.f32.mrf.mxu0
        %v477 = vadd.f32 0.0, %v476
        %v478 = vpop.f32.mrf.mxu0
        %v479 = vadd.f32 0.0, %v478
        %v480 = vpop.f32.mrf.mxu0
        %v481 = vadd.f32 0.0, %v480
        %v482 = vpop.f32.mrf.mxu0
        %v483 = vadd.f32 0.0, %v482
        %484 = vdwg.mxu0
        %v485 = vmax.f32 %v467, 0.0
        %v486 = vmax.f32 %v469, 0.0
        %v487 = vmax.f32 %v471, 0.0
        %v488 = vmax.f32 %v473, 0.0
        %v489 = vmax.f32 %v477, 0.0
        %v490 = vmax.f32 %v479, 0.0
        %v491 = vmax.f32 %v481, 0.0
        %v492 = vmax.f32 %v483, 0.0
        %493 = vrot.lane.b32.xlu0 %v485, 17
        %v494 = vpop.permute.xlu0 %493
        %495 = vrot.lane.b32.xlu0 %v487, 17
        %v496 = vpop.permute.xlu0 %495
        %497 = vrot.lane.b32.xlu0 %v489, 17
        %v498 = vpop.permute.xlu0 %497
        %499 = vrot.lane.b32.xlu0 %v491, 17
        %v500 = vpop.permute.xlu0 %499
        %501 = vrot.lane.b32.xlu0 %v486, 17
        %v502 = vpop.permute.xlu0 %501
        %503 = vrot.lane.b32.xlu0 %v488, 17
        %v504 = vpop.permute.xlu0 %503
        %505 = vrot.lane.b32.xlu0 %v490, 17
        %v506 = vpop.permute.xlu0 %505
        %507 = vrot.lane.b32.xlu0 %v492, 17
        %v508 = vpop.permute.xlu0 %507
        %v509 = vsel %vm295, %v494, %v502
        %v510 = vsel %vm295, %v496, %v504
        %v511 = vsel %vm295, %v498, %v506
        %v512 = vsel %vm295, %v500, %v508
        %v513 = vsel %vm295, %v502, %v494
        %v514 = vsel %vm295, %v504, %v496
        %v515 = vsel %vm295, %v506, %v498
        %v516 = vsel %vm295, %v508, %v500
        %v517 = vsel %vm300, %v513, 0.0
        %v518 = vsel %vm301, %v509, 0.0
        %v519 = vsel %vm300, %v514, 0.0
        %v520 = vsel %vm301, %v510, 0.0
        %v521 = vsel %vm300, %v515, 0.0
        %v522 = vsel %vm301, %v511, 0.0
        %v523 = vsel %vm300, %v516, 0.0
        %v524 = vsel %vm301, %v512, 0.0
        %526 = vset.pattern.permute.xlu0 0
        %527 = vperm.xlu0 %526, %v263
        %v528 = vpop.permute.xlu0 %527
        %531 = vset.pattern.permute.xlu0 0
        %532 = vperm.xlu0 %531, %v264
        %v533 = vpop.permute.xlu0 %532
        %536 = vset.pattern.permute.xlu0 0
        %537 = vperm.xlu0 %536, %v265
        %v538 = vpop.permute.xlu0 %537
        %541 = vset.pattern.permute.xlu0 0
        %542 = vperm.xlu0 %541, %v266
        %v543 = vpop.permute.xlu0 %542
        %v545 = vmul.f32 %v517, %v528
        %v546 = vmul.f32 %v518, %v528
        %v547 = vmul.f32 %v519, %v533
        %v548 = vmul.f32 %v520, %v533
        %v549 = vmul.f32 %v521, %v538
        %v550 = vmul.f32 %v522, %v538
        %v551 = vmul.f32 %v523, %v543
        %v552 = vmul.f32 %v524, %v543
        %v553 = vadd.f32 %v545, 0.0
        %v554 = vadd.f32 %v546, 0.0
        %v555 = vadd.f32 %v547, 0.0
        %v556 = vadd.f32 %v548, 0.0
        %v557 = vadd.f32 %v549, 0.0
        %v558 = vadd.f32 %v550, 0.0
        %v559 = vadd.f32 %v551, 0.0
        %v560 = vadd.f32 %v552, 0.0
        %561 = vrot.lane.b32.xlu0 %v485, 16
        %v562 = vpop.permute.xlu0 %561
        %563 = vrot.lane.b32.xlu0 %v487, 16
        %v564 = vpop.permute.xlu0 %563
        %565 = vrot.lane.b32.xlu0 %v489, 16
        %v566 = vpop.permute.xlu0 %565
        %567 = vrot.lane.b32.xlu0 %v491, 16
        %v568 = vpop.permute.xlu0 %567
        %569 = vrot.lane.b32.xlu0 %v486, 16
        %v570 = vpop.permute.xlu0 %569
        %571 = vrot.lane.b32.xlu0 %v488, 16
        %v572 = vpop.permute.xlu0 %571
        %573 = vrot.lane.b32.xlu0 %v490, 16
        %v574 = vpop.permute.xlu0 %573
        %575 = vrot.lane.b32.xlu0 %v492, 16
        %v576 = vpop.permute.xlu0 %575
        %v577 = vsel %vm308, %v562, %v570
        %v578 = vsel %vm308, %v564, %v572
        %v579 = vsel %vm308, %v566, %v574
        %v580 = vsel %vm308, %v568, %v576
        %v581 = vsel %vm308, %v570, %v562
        %v582 = vsel %vm308, %v572, %v564
        %v583 = vsel %vm308, %v574, %v566
        %v584 = vsel %vm308, %v576, %v568
        %v585 = vsel %vm313, %v581, 0.0
        %v586 = vsel %vm314, %v577, 0.0
        %v587 = vsel %vm313, %v582, 0.0
        %v588 = vsel %vm314, %v578, 0.0
        %v589 = vsel %vm313, %v583, 0.0
        %v590 = vsel %vm314, %v579, 0.0
        %v591 = vsel %vm313, %v584, 0.0
        %v592 = vsel %vm314, %v580, 0.0
        %593 = vset.pattern.permute.xlu0 1
        %594 = vperm.xlu0 %593, %v263
        %v595 = vpop.permute.xlu0 %594
        %597 = vset.pattern.permute.xlu0 1
        %598 = vperm.xlu0 %597, %v264
        %v599 = vpop.permute.xlu0 %598
        %601 = vset.pattern.permute.xlu0 1
        %602 = vperm.xlu0 %601, %v265
        %v603 = vpop.permute.xlu0 %602
        %605 = vset.pattern.permute.xlu0 1
        %606 = vperm.xlu0 %605, %v266
        %v607 = vpop.permute.xlu0 %606
        %v609 = vmul.f32 %v585, %v595
        %v610 = vmul.f32 %v586, %v595
        %v611 = vmul.f32 %v587, %v599
        %v612 = vmul.f32 %v588, %v599
        %v613 = vmul.f32 %v589, %v603
        %v614 = vmul.f32 %v590, %v603
        %v615 = vmul.f32 %v591, %v607
        %v616 = vmul.f32 %v592, %v607
        %v617 = vadd.f32 %v553, %v609
        %v618 = vadd.f32 %v554, %v610
        %v619 = vadd.f32 %v555, %v611
        %v620 = vadd.f32 %v556, %v612
        %v621 = vadd.f32 %v557, %v613
        %v622 = vadd.f32 %v558, %v614
        %v623 = vadd.f32 %v559, %v615
        %v624 = vadd.f32 %v560, %v616
        %625 = vrot.lane.b32.xlu0 %v485, 15
        %v626 = vpop.permute.xlu0 %625
        %627 = vrot.lane.b32.xlu0 %v487, 15
        %v628 = vpop.permute.xlu0 %627
        %629 = vrot.lane.b32.xlu0 %v489, 15
        %v630 = vpop.permute.xlu0 %629
        %631 = vrot.lane.b32.xlu0 %v491, 15
        %v632 = vpop.permute.xlu0 %631
        %633 = vrot.lane.b32.xlu0 %v486, 15
        %v634 = vpop.permute.xlu0 %633
        %635 = vrot.lane.b32.xlu0 %v488, 15
        %v636 = vpop.permute.xlu0 %635
        %637 = vrot.lane.b32.xlu0 %v490, 15
        %v638 = vpop.permute.xlu0 %637
        %639 = vrot.lane.b32.xlu0 %v492, 15
        %v640 = vpop.permute.xlu0 %639
        %v641 = vsel %vm321, %v626, %v634
        %v642 = vsel %vm321, %v628, %v636
        %v643 = vsel %vm321, %v630, %v638
        %v644 = vsel %vm321, %v632, %v640
        %v645 = vsel %vm321, %v634, %v626
        %v646 = vsel %vm321, %v636, %v628
        %v647 = vsel %vm321, %v638, %v630
        %v648 = vsel %vm321, %v640, %v632
        %v649 = vsel %vm326, %v645, 0.0
        %v650 = vsel %vm327, %v641, 0.0
        %v651 = vsel %vm326, %v646, 0.0
        %v652 = vsel %vm327, %v642, 0.0
        %v653 = vsel %vm326, %v647, 0.0
        %v654 = vsel %vm327, %v643, 0.0
        %v655 = vsel %vm326, %v648, 0.0
        %v656 = vsel %vm327, %v644, 0.0
        %657 = vset.pattern.permute.xlu0 2
        %658 = vperm.xlu0 %657, %v263
        %v659 = vpop.permute.xlu0 %658
        %661 = vset.pattern.permute.xlu0 2
        %662 = vperm.xlu0 %661, %v264
        %v663 = vpop.permute.xlu0 %662
        %665 = vset.pattern.permute.xlu0 2
        %666 = vperm.xlu0 %665, %v265
        %v667 = vpop.permute.xlu0 %666
        %669 = vset.pattern.permute.xlu0 2
        %670 = vperm.xlu0 %669, %v266
        %v671 = vpop.permute.xlu0 %670
        %v673 = vmul.f32 %v649, %v659
        %v674 = vmul.f32 %v650, %v659
        %v675 = vmul.f32 %v651, %v663
        %v676 = vmul.f32 %v652, %v663
        %v677 = vmul.f32 %v653, %v667
        %v678 = vmul.f32 %v654, %v667
        %v679 = vmul.f32 %v655, %v671
        %v680 = vmul.f32 %v656, %v671
        %v681 = vadd.f32 %v617, %v673
        %v682 = vadd.f32 %v618, %v674
        %v683 = vadd.f32 %v619, %v675
        %v684 = vadd.f32 %v620, %v676
        %v685 = vadd.f32 %v621, %v677
        %v686 = vadd.f32 %v622, %v678
        %v687 = vadd.f32 %v623, %v679
        %v688 = vadd.f32 %v624, %v680
        %689 = vrot.lane.b32.xlu0 %v485, 1
        %v690 = vpop.permute.xlu0 %689
        %691 = vrot.lane.b32.xlu0 %v487, 1
        %v692 = vpop.permute.xlu0 %691
        %693 = vrot.lane.b32.xlu0 %v489, 1
        %v694 = vpop.permute.xlu0 %693
        %695 = vrot.lane.b32.xlu0 %v491, 1
        %v696 = vpop.permute.xlu0 %695
        %697 = vrot.lane.b32.xlu0 %v486, 1
        %v698 = vpop.permute.xlu0 %697
        %699 = vrot.lane.b32.xlu0 %v488, 1
        %v700 = vpop.permute.xlu0 %699
        %701 = vrot.lane.b32.xlu0 %v490, 1
        %v702 = vpop.permute.xlu0 %701
        %703 = vrot.lane.b32.xlu0 %v492, 1
        %v704 = vpop.permute.xlu0 %703
        %v705 = vsel %vm334, %v690, %v698
        %v706 = vsel %vm334, %v692, %v700
        %v707 = vsel %vm334, %v694, %v702
        %v708 = vsel %vm334, %v696, %v704
        %v709 = vsel %vm334, %v698, %v690
        %v710 = vsel %vm334, %v700, %v692
        %v711 = vsel %vm334, %v702, %v694
        %v712 = vsel %vm334, %v704, %v696
        %v713 = vsel %vm339, %v709, 0.0
        %v714 = vsel %vm340, %v705, 0.0
        %v715 = vsel %vm339, %v710, 0.0
        %v716 = vsel %vm340, %v706, 0.0
        %v717 = vsel %vm339, %v711, 0.0
        %v718 = vsel %vm340, %v707, 0.0
        %v719 = vsel %vm339, %v712, 0.0
        %v720 = vsel %vm340, %v708, 0.0
        %721 = vset.pattern.permute.xlu0 3
        %722 = vperm.xlu0 %721, %v263
        %v723 = vpop.permute.xlu0 %722
        %725 = vset.pattern.permute.xlu0 3
        %726 = vperm.xlu0 %725, %v264
        %v727 = vpop.permute.xlu0 %726
        %729 = vset.pattern.permute.xlu0 3
        %730 = vperm.xlu0 %729, %v265
        %v731 = vpop.permute.xlu0 %730
        %733 = vset.pattern.permute.xlu0 3
        %734 = vperm.xlu0 %733, %v266
        %v735 = vpop.permute.xlu0 %734
        %v737 = vmul.f32 %v713, %v723
        %v738 = vmul.f32 %v714, %v723
        %v739 = vmul.f32 %v715, %v727
        %v740 = vmul.f32 %v716, %v727
        %v741 = vmul.f32 %v717, %v731
        %v742 = vmul.f32 %v718, %v731
        %v743 = vmul.f32 %v719, %v735
        %v744 = vmul.f32 %v720, %v735
        %v745 = vadd.f32 %v681, %v737
        %v746 = vadd.f32 %v682, %v738
        %v747 = vadd.f32 %v683, %v739
        %v748 = vadd.f32 %v684, %v740
        %v749 = vadd.f32 %v685, %v741
        %v750 = vadd.f32 %v686, %v742
        %v751 = vadd.f32 %v687, %v743
        %v752 = vadd.f32 %v688, %v744
        %753 = vset.pattern.permute.xlu0 4
        %754 = vperm.xlu0 %753, %v263
        %v755 = vpop.permute.xlu0 %754
        %757 = vset.pattern.permute.xlu0 4
        %758 = vperm.xlu0 %757, %v264
        %v759 = vpop.permute.xlu0 %758
        %761 = vset.pattern.permute.xlu0 4
        %762 = vperm.xlu0 %761, %v265
        %v763 = vpop.permute.xlu0 %762
        %765 = vset.pattern.permute.xlu0 4
        %766 = vperm.xlu0 %765, %v266
        %v767 = vpop.permute.xlu0 %766
        %v769 = vmul.f32 %v485, %v755
        %v770 = vmul.f32 %v486, %v755
        %v771 = vmul.f32 %v487, %v759
        %v772 = vmul.f32 %v488, %v759
        %v773 = vmul.f32 %v489, %v763
        %v774 = vmul.f32 %v490, %v763
        %v775 = vmul.f32 %v491, %v767
        %v776 = vmul.f32 %v492, %v767
        %v777 = vadd.f32 %v745, %v769
        %v778 = vadd.f32 %v746, %v770
        %v779 = vadd.f32 %v747, %v771
        %v780 = vadd.f32 %v748, %v772
        %v781 = vadd.f32 %v749, %v773
        %v782 = vadd.f32 %v750, %v774
        %v783 = vadd.f32 %v751, %v775
        %v784 = vadd.f32 %v752, %v776
        %785 = vrot.lane.b32.xlu0 %v485, 127
        %v786 = vpop.permute.xlu0 %785
        %787 = vrot.lane.b32.xlu0 %v487, 127
        %v788 = vpop.permute.xlu0 %787
        %789 = vrot.lane.b32.xlu0 %v489, 127
        %v790 = vpop.permute.xlu0 %789
        %791 = vrot.lane.b32.xlu0 %v491, 127
        %v792 = vpop.permute.xlu0 %791
        %793 = vrot.lane.b32.xlu0 %v486, 127
        %v794 = vpop.permute.xlu0 %793
        %795 = vrot.lane.b32.xlu0 %v488, 127
        %v796 = vpop.permute.xlu0 %795
        %797 = vrot.lane.b32.xlu0 %v490, 127
        %v798 = vpop.permute.xlu0 %797
        %799 = vrot.lane.b32.xlu0 %v492, 127
        %v800 = vpop.permute.xlu0 %799
        %v801 = vsel %vm347, %v786, %v794
        %v802 = vsel %vm347, %v788, %v796
        %v803 = vsel %vm347, %v790, %v798
        %v804 = vsel %vm347, %v792, %v800
        %v805 = vsel %vm347, %v794, %v786
        %v806 = vsel %vm347, %v796, %v788
        %v807 = vsel %vm347, %v798, %v790
        %v808 = vsel %vm347, %v800, %v792
        %v809 = vsel %vm352, %v801, 0.0
        %v810 = vsel %vm353, %v805, 0.0
        %v811 = vsel %vm352, %v802, 0.0
        %v812 = vsel %vm353, %v806, 0.0
        %v813 = vsel %vm352, %v803, 0.0
        %v814 = vsel %vm353, %v807, 0.0
        %v815 = vsel %vm352, %v804, 0.0
        %v816 = vsel %vm353, %v808, 0.0
        %817 = vset.pattern.permute.xlu0 5
        %818 = vperm.xlu0 %817, %v263
        %v819 = vpop.permute.xlu0 %818
        %821 = vset.pattern.permute.xlu0 5
        %822 = vperm.xlu0 %821, %v264
        %v823 = vpop.permute.xlu0 %822
        %825 = vset.pattern.permute.xlu0 5
        %826 = vperm.xlu0 %825, %v265
        %v827 = vpop.permute.xlu0 %826
        %829 = vset.pattern.permute.xlu0 5
        %830 = vperm.xlu0 %829, %v266
        %v831 = vpop.permute.xlu0 %830
        %v833 = vmul.f32 %v809, %v819
        %v834 = vmul.f32 %v810, %v819
        %v835 = vmul.f32 %v811, %v823
        %v836 = vmul.f32 %v812, %v823
        %v837 = vmul.f32 %v813, %v827
        %v838 = vmul.f32 %v814, %v827
        %v839 = vmul.f32 %v815, %v831
        %v840 = vmul.f32 %v816, %v831
        %v841 = vadd.f32 %v777, %v833
        %v842 = vadd.f32 %v778, %v834
        %v843 = vadd.f32 %v779, %v835
        %v844 = vadd.f32 %v780, %v836
        %v845 = vadd.f32 %v781, %v837
        %v846 = vadd.f32 %v782, %v838
        %v847 = vadd.f32 %v783, %v839
        %v848 = vadd.f32 %v784, %v840
        %849 = vrot.lane.b32.xlu0 %v485, 113
        %v850 = vpop.permute.xlu0 %849
        %851 = vrot.lane.b32.xlu0 %v487, 113
        %v852 = vpop.permute.xlu0 %851
        %853 = vrot.lane.b32.xlu0 %v489, 113
        %v854 = vpop.permute.xlu0 %853
        %855 = vrot.lane.b32.xlu0 %v491, 113
        %v856 = vpop.permute.xlu0 %855
        %857 = vrot.lane.b32.xlu0 %v486, 113
        %v858 = vpop.permute.xlu0 %857
        %859 = vrot.lane.b32.xlu0 %v488, 113
        %v860 = vpop.permute.xlu0 %859
        %861 = vrot.lane.b32.xlu0 %v490, 113
        %v862 = vpop.permute.xlu0 %861
        %863 = vrot.lane.b32.xlu0 %v492, 113
        %v864 = vpop.permute.xlu0 %863
        %v865 = vsel %vm360, %v850, %v858
        %v866 = vsel %vm360, %v852, %v860
        %v867 = vsel %vm360, %v854, %v862
        %v868 = vsel %vm360, %v856, %v864
        %v869 = vsel %vm360, %v858, %v850
        %v870 = vsel %vm360, %v860, %v852
        %v871 = vsel %vm360, %v862, %v854
        %v872 = vsel %vm360, %v864, %v856
        %v873 = vsel %vm365, %v865, 0.0
        %v874 = vsel %vm366, %v869, 0.0
        %v875 = vsel %vm365, %v866, 0.0
        %v876 = vsel %vm366, %v870, 0.0
        %v877 = vsel %vm365, %v867, 0.0
        %v878 = vsel %vm366, %v871, 0.0
        %v879 = vsel %vm365, %v868, 0.0
        %v880 = vsel %vm366, %v872, 0.0
        %881 = vset.pattern.permute.xlu0 6
        %882 = vperm.xlu0 %881, %v263
        %v883 = vpop.permute.xlu0 %882
        %885 = vset.pattern.permute.xlu0 6
        %886 = vperm.xlu0 %885, %v264
        %v887 = vpop.permute.xlu0 %886
        %889 = vset.pattern.permute.xlu0 6
        %890 = vperm.xlu0 %889, %v265
        %v891 = vpop.permute.xlu0 %890
        %893 = vset.pattern.permute.xlu0 6
        %894 = vperm.xlu0 %893, %v266
        %v895 = vpop.permute.xlu0 %894
        %v897 = vmul.f32 %v873, %v883
        %v898 = vmul.f32 %v874, %v883
        %v899 = vmul.f32 %v875, %v887
        %v900 = vmul.f32 %v876, %v887
        %v901 = vmul.f32 %v877, %v891
        %v902 = vmul.f32 %v878, %v891
        %v903 = vmul.f32 %v879, %v895
        %v904 = vmul.f32 %v880, %v895
        %v905 = vadd.f32 %v841, %v897
        %v906 = vadd.f32 %v842, %v898
        %v907 = vadd.f32 %v843, %v899
        %v908 = vadd.f32 %v844, %v900
        %v909 = vadd.f32 %v845, %v901
        %v910 = vadd.f32 %v846, %v902
        %v911 = vadd.f32 %v847, %v903
        %v912 = vadd.f32 %v848, %v904
        %913 = vrot.lane.b32.xlu0 %v485, 112
        %v914 = vpop.permute.xlu0 %913
        %915 = vrot.lane.b32.xlu0 %v487, 112
        %v916 = vpop.permute.xlu0 %915
        %917 = vrot.lane.b32.xlu0 %v489, 112
        %v918 = vpop.permute.xlu0 %917
        %919 = vrot.lane.b32.xlu0 %v491, 112
        %v920 = vpop.permute.xlu0 %919
        %921 = vrot.lane.b32.xlu0 %v486, 112
        %v922 = vpop.permute.xlu0 %921
        %923 = vrot.lane.b32.xlu0 %v488, 112
        %v924 = vpop.permute.xlu0 %923
        %925 = vrot.lane.b32.xlu0 %v490, 112
        %v926 = vpop.permute.xlu0 %925
        %927 = vrot.lane.b32.xlu0 %v492, 112
        %v928 = vpop.permute.xlu0 %927
        %v929 = vsel %vm373, %v914, %v922
        %v930 = vsel %vm373, %v916, %v924
        %v931 = vsel %vm373, %v918, %v926
        %v932 = vsel %vm373, %v920, %v928
        %v933 = vsel %vm373, %v922, %v914
        %v934 = vsel %vm373, %v924, %v916
        %v935 = vsel %vm373, %v926, %v918
        %v936 = vsel %vm373, %v928, %v920
        %v937 = vsel %vm378, %v929, 0.0
        %v938 = vsel %vm379, %v933, 0.0
        %v939 = vsel %vm378, %v930, 0.0
        %v940 = vsel %vm379, %v934, 0.0
        %v941 = vsel %vm378, %v931, 0.0
        %v942 = vsel %vm379, %v935, 0.0
        %v943 = vsel %vm378, %v932, 0.0
        %v944 = vsel %vm379, %v936, 0.0
        %945 = vset.pattern.permute.xlu0 7
        %946 = vperm.xlu0 %945, %v263
        %v947 = vpop.permute.xlu0 %946
        %949 = vset.pattern.permute.xlu0 7
        %950 = vperm.xlu0 %949, %v264
        %v951 = vpop.permute.xlu0 %950
        %953 = vset.pattern.permute.xlu0 7
        %954 = vperm.xlu0 %953, %v265
        %v955 = vpop.permute.xlu0 %954
        %957 = vset.pattern.permute.xlu0 7
        %958 = vperm.xlu0 %957, %v266
        %v959 = vpop.permute.xlu0 %958
        %v961 = vmul.f32 %v937, %v947
        %v962 = vmul.f32 %v938, %v947
        %v963 = vmul.f32 %v939, %v951
        %v964 = vmul.f32 %v940, %v951
        %v965 = vmul.f32 %v941, %v955
        %v966 = vmul.f32 %v942, %v955
        %v967 = vmul.f32 %v943, %v959
        %v968 = vmul.f32 %v944, %v959
        %v969 = vadd.f32 %v905, %v961
        %v970 = vadd.f32 %v906, %v962
        %v971 = vadd.f32 %v907, %v963
        %v972 = vadd.f32 %v908, %v964
        %v973 = vadd.f32 %v909, %v965
        %v974 = vadd.f32 %v910, %v966
        %v975 = vadd.f32 %v911, %v967
        %v976 = vadd.f32 %v912, %v968
        %977 = vrot.lane.b32.xlu0 %v485, 111
        %v978 = vpop.permute.xlu0 %977
        %979 = vrot.lane.b32.xlu0 %v487, 111
        %v980 = vpop.permute.xlu0 %979
        %981 = vrot.lane.b32.xlu0 %v489, 111
        %v982 = vpop.permute.xlu0 %981
        %983 = vrot.lane.b32.xlu0 %v491, 111
        %v984 = vpop.permute.xlu0 %983
        %985 = vrot.lane.b32.xlu0 %v486, 111
        %v986 = vpop.permute.xlu0 %985
        %987 = vrot.lane.b32.xlu0 %v488, 111
        %v988 = vpop.permute.xlu0 %987
        %989 = vrot.lane.b32.xlu0 %v490, 111
        %v990 = vpop.permute.xlu0 %989
        %991 = vrot.lane.b32.xlu0 %v492, 111
        %v992 = vpop.permute.xlu0 %991
        %v993 = vsel %vm386, %v978, %v986
        %v994 = vsel %vm386, %v980, %v988
        %v995 = vsel %vm386, %v982, %v990
        %v996 = vsel %vm386, %v984, %v992
        %v997 = vsel %vm386, %v986, %v978
        %v998 = vsel %vm386, %v988, %v980
        %v999 = vsel %vm386, %v990, %v982
        %v1000 = vsel %vm386, %v992, %v984
        %v1001 = vsel %vm391, %v993, 0.0
        %v1002 = vsel %vm392, %v997, 0.0
        %v1003 = vsel %vm391, %v994, 0.0
        %v1004 = vsel %vm392, %v998, 0.0
        %v1005 = vsel %vm391, %v995, 0.0
        %v1006 = vsel %vm392, %v999, 0.0
        %v1007 = vsel %vm391, %v996, 0.0
        %v1008 = vsel %vm392, %v1000, 0.0
        %1009 = vset.pattern.permute.xlu0 8
        %1010 = vperm.xlu0 %1009, %v263
        %v1011 = vpop.permute.xlu0 %1010
        %1013 = vset.pattern.permute.xlu0 8
        %1014 = vperm.xlu0 %1013, %v264
        %v1015 = vpop.permute.xlu0 %1014
        %1017 = vset.pattern.permute.xlu0 8
        %1018 = vperm.xlu0 %1017, %v265
        %v1019 = vpop.permute.xlu0 %1018
        %1021 = vset.pattern.permute.xlu0 8
        %1022 = vperm.xlu0 %1021, %v266
        %v1023 = vpop.permute.xlu0 %1022
        %v1025 = vmul.f32 %v1001, %v1011
        %v1026 = vmul.f32 %v1002, %v1011
        %v1027 = vmul.f32 %v1003, %v1015
        %v1028 = vmul.f32 %v1004, %v1015
        %v1029 = vmul.f32 %v1005, %v1019
        %v1030 = vmul.f32 %v1006, %v1019
        %v1031 = vmul.f32 %v1007, %v1023
        %v1032 = vmul.f32 %v1008, %v1023
        %v1033 = vadd.f32 %v969, %v1025
        %v1034 = vadd.f32 %v970, %v1026
        %v1035 = vadd.f32 %v971, %v1027
        %v1036 = vadd.f32 %v972, %v1028
        %v1037 = vadd.f32 %v973, %v1029
        %v1038 = vadd.f32 %v974, %v1030
        %v1039 = vadd.f32 %v975, %v1031
        %v1040 = vadd.f32 %v976, %v1032
        %1041 = vset.pattern.permute.xlu0 9
        %1042 = vperm.xlu0 %1041, %v263
        %v1043 = vpop.permute.xlu0 %1042
        %1045 = vset.pattern.permute.xlu0 9
        %1046 = vperm.xlu0 %1045, %v264
        %v1047 = vpop.permute.xlu0 %1046
        %1049 = vset.pattern.permute.xlu0 9
        %1050 = vperm.xlu0 %1049, %v265
        %v1051 = vpop.permute.xlu0 %1050
        %1053 = vset.pattern.permute.xlu0 9
        %1054 = vperm.xlu0 %1053, %v266
        %v1055 = vpop.permute.xlu0 %1054
        %v1057 = vadd.f32 %v1033, %v1043
        %v1058 = vadd.f32 %v1034, %v1043
        %v1059 = vadd.f32 %v1035, %v1047
        %v1060 = vadd.f32 %v1036, %v1047
        %v1061 = vadd.f32 %v1037, %v1051
        %v1062 = vadd.f32 %v1038, %v1051
        %v1063 = vadd.f32 %v1039, %v1055
        %v1064 = vadd.f32 %v1040, %v1055
        %v1065 = vmax.f32 %v1057, 0.0
        %v1066 = vmax.f32 %v1058, 0.0
        %v1067 = vmax.f32 %v1059, 0.0
        %v1068 = vmax.f32 %v1060, 0.0
        %v1069 = vmax.f32 %v1061, 0.0
        %v1070 = vmax.f32 %v1062, 0.0
        %v1071 = vmax.f32 %v1063, 0.0
        %v1072 = vmax.f32 %v1064, 0.0
        %v1073 = vadd.f32 %v1065, %v1066
        %1074 = vadd.xlane.f32.xlu0 %v1073
        %v1075 = vpop.xlane.xlu0 %1074
        %v1076 = vadd.f32 %v1067, %v1068
        %1077 = vadd.xlane.f32.xlu0 %v1076
        %v1078 = vpop.xlane.xlu0 %1077
        %v1079 = vadd.f32 %v1069, %v1070
        %1080 = vadd.xlane.f32.xlu0 %v1079
        %v1081 = vpop.xlane.xlu0 %1080
        %v1082 = vadd.f32 %v1071, %v1072
        %1083 = vadd.xlane.f32.xlu0 %v1082
        %v1084 = vpop.xlane.xlu0 %1083
        %v1085 = vrcp.pop 256.0
        %v1086 = vmul.f32 %v1075, %v1085
        %v1087 = vmul.f32 %v1078, %v1085
        %v1088 = vmul.f32 %v1081, %v1085
        %v1089 = vmul.f32 %v1084, %v1085
        %v1090 = vmul.f32 %v263, %v1086
        %v1091 = vmul.f32 %v264, %v1087
        %v1092 = vmul.f32 %v265, %v1088
        %v1093 = vmul.f32 %v266, %v1089
        %vm1094 = vcmask 154712
        %v1095 = vsel %vm1094, %v1090, 0.0
        %v1096 = vsel %vm1094, %v1091, 0.0
        %v1097 = vadd.f32 %v1095, %v1096
        %v1098 = vsel %vm1094, %v1092, 0.0
        %v1099 = vadd.f32 %v1097, %v1098
        %v1100 = vsel %vm1094, %v1093, 0.0
        %v1101 = vadd.f32 %v1099, %v1100
        %v1102 = vrot.slane %v1101, 4
        %v1103 = vadd.f32 %v1101, %v1102
        %v1104 = vrot.slane %v1103, 2
        %v1105 = vadd.f32 %v1103, %v1104
        %v1106 = vrot.slane %v1105, 1
        %v1107 = vadd.f32 %v1105, %v1106
        %1108 = vrot.lane.b32.xlu0 %v263, 112
        %v1109 = vpop.permute.xlu0 %1108
        %v1111 = vadd.f32 %v1107, %v1109
        %v1112 = vmax.f32 %v1111, 0.0
        %v1113 = vlaneseq
        %v1114 = vshrl.u32 %v1113, 7
        %v1115 = vsub.s32 0, %v1114
        %v1116 = vrot.slane %v1112, %v1115
        %1118 = vrot.lane.b32.xlu0 %v1116, 8
        %v1119 = vpop.permute.xlu0 %1118
        %v1121 = vmul.f32 %v263, %v1119
        %v1122 = vmul.f32 %v264, %v1119
        %v1123 = vmul.f32 %v265, %v1119
        %v1124 = vmul.f32 %v266, %v1119
        %1129 = vrot.lane.b32.xlu0 %v1121, 109
        %v1130 = vpop.permute.xlu0 %1129
        %1131 = vrot.lane.b32.xlu0 %v1122, 109
        %v1132 = vpop.permute.xlu0 %1131
        %1133 = vrot.lane.b32.xlu0 %v1123, 109
        %v1134 = vpop.permute.xlu0 %1133
        %1135 = vrot.lane.b32.xlu0 %v1124, 109
        %v1136 = vpop.permute.xlu0 %1135
        %vm1141 = vcmask 64512
        %v1142 = vsel %vm1141, %v1130, 0.0
        %1143 = vadd.xlane.f32.xlu0 %v1142
        %v1144 = vpop.xlane.xlu0 %1143
        %v1145 = vsel %vm1141, %v1132, 0.0
        %1146 = vadd.xlane.f32.xlu0 %v1145
        %v1147 = vpop.xlane.xlu0 %1146
        %v1148 = vsel %vm1141, %v1134, 0.0
        %1149 = vadd.xlane.f32.xlu0 %v1148
        %v1150 = vpop.xlane.xlu0 %1149
        %v1151 = vsel %vm1141, %v1136, 0.0
        %1152 = vadd.xlane.f32.xlu0 %v1151
        %v1153 = vpop.xlane.xlu0 %1152
        %v1154 = vadd.f32 %v1144, %v263
        %v1155 = vadd.f32 %v1147, %v264
        %v1156 = vadd.f32 %v1150, %v265
        %v1157 = vadd.f32 %v1153, %v266
        %v1158 = vmul.f32 %v1154, 0.16666667
        %v1159 = vmul.f32 %v1155, 0.16666667
        %v1160 = vmul.f32 %v1156, 0.16666667
        %v1161 = vmul.f32 %v1157, 0.16666667
        %v1162 = vadd.f32 %v1158, 0.5
        %v1163 = vadd.f32 %v1159, 0.5
        %v1164 = vadd.f32 %v1160, 0.5
        %v1165 = vadd.f32 %v1161, 0.5
        %v1166 = vmax.f32 %v1162, 0.0
        %v1167 = vmax.f32 %v1163, 0.0
        %v1168 = vmax.f32 %v1164, 0.0
        %v1169 = vmax.f32 %v1165, 0.0
        %v1170 = vmin.f32 %v1166, 1.0
        %v1171 = vmin.f32 %v1167, 1.0
        %v1172 = vmin.f32 %v1168, 1.0
        %v1173 = vmin.f32 %v1169, 1.0
        %1178 = vrot.lane.b32.xlu0 %v1170, 118
        %v1179 = vpop.permute.xlu0 %1178
        %1180 = vrot.lane.b32.xlu0 %v1171, 118
        %v1181 = vpop.permute.xlu0 %1180
        %1182 = vrot.lane.b32.xlu0 %v1172, 118
        %v1183 = vpop.permute.xlu0 %1182
        %1184 = vrot.lane.b32.xlu0 %v1173, 118
        %v1185 = vpop.permute.xlu0 %1184
        %1190 = vxpose.xlu0.b32.start [1/16] %v1179, 128
        %1191 = vxpose.xlu0.b32.cont [2/16] %v1181, 128
        %1192 = vxpose.xlu0.b32.cont [3/16] %v1183, 128
        %1193 = vxpose.xlu0.b32.cont [4/16] %v1185, 128
        %1194 = vxpose.xlu0.b32.cont [5/16] 0.0, 128
        %1195 = vxpose.xlu0.b32.cont [6/16] 0.0, 128
        %1196 = vxpose.xlu0.b32.cont [7/16] 0.0, 128
        %1197 = vxpose.xlu0.b32.cont [8/16] 0.0, 128
        %1198 = vxpose.xlu0.b32.cont [9/16] 0.0, 128
        %1199 = vxpose.xlu0.b32.cont [10/16] 0.0, 128
        %1200 = vxpose.xlu0.b32.cont [11/16] 0.0, 128
        %1201 = vxpose.xlu0.b32.cont [12/16] 0.0, 128
        %1202 = vxpose.xlu0.b32.cont [13/16] 0.0, 128
        %1203 = vxpose.xlu0.b32.cont [14/16] 0.0, 128
        %1204 = vxpose.xlu0.b32.cont [15/16] 0.0, 128
        %1205 = vxpose.xlu0.b32.end [16/16] 0.0, 128
        %v1206 = vpop.trf.xlu0
        %v1207 = vpop.trf.xlu0
        %v1208 = vpop.trf.xlu0
        %v1209 = vpop.trf.xlu0
        %v1210 = vpop.trf.xlu0
        %v1211 = vpop.trf.xlu0
        %v1212 = vpop.trf.xlu0
        %v1213 = vpop.trf.xlu0
        %v1214 = vpop.trf.xlu0
        %v1215 = vpop.trf.xlu0
        %v1216 = vpop.trf.xlu0
        %v1217 = vpop.trf.xlu0
        %v1218 = vpop.trf.xlu0
        %v1219 = vpop.trf.xlu0
        %v1220 = vpop.trf.xlu0
        %v1221 = vpop.trf.xlu0
        %v1222 = vlaneseq
        %v1223 = vshrl.u32 %v1222, 7
        %v1224 = vsub.s32 0, %v1223
        %v1225 = vrot.slane %v1206, %v1224
        %v1226 = vmul.f32 %v267, %v1225
        %v1227 = vpack.c.bf16 %v1226, %v1226
        %v1228 = vpack.c.bf16 %v1067, %v1065
        %v1229 = vpack.c.bf16 %v1068, %v1066
        %v1230 = vpack.c.bf16 %v1071, %v1069
        %v1231 = vpack.c.bf16 %v1072, %v1070
        %1233 = vset.pattern.permute.xlu0 32
        %1234 = vperm.xlu0 %1233, %v267
        %v1235 = vpop.permute.xlu0 %1234
        %vm1237 = vcmask 261120
        %v1239 = vsel %vm1237, %v1227, 0
        %1241 = vmatprep.subr.bf16.mxu0 0
        %1242 = vmatpush1.bf16.msra.mxu0 0
        %1243 = vmatprep.subr.bf16.mxu0 0
        %1244 = vmatpush1.bf16.msra.mxu0 0
        %1245 = vmatprep.subr.bf16.mxu0 0
        %1246 = vmatpush1.bf16.msra.mxu0 0
        %1247 = vmatprep.subr.bf16.mxu0 0
        %1248 = vmatpush1.bf16.msra.mxu0 0
        %1249 = vmatprep.subr.bf16.mxu0 0
        %1250 = vmatpush1.bf16.msra.mxu0 0
        %1251 = vmatprep.subr.bf16.mxu0 0
        %1252 = vmatpush1.bf16.msra.mxu0 0
        %1253 = vmatprep.subr.bf16.mxu0 %v1231
        %1254 = vmatpush1.bf16.msra.mxu0 %v1230
        %1255 = vmatprep.subr.bf16.mxu0 %v1229
        %1256 = vmatpush1.bf16.msra.mxu0 %v1228
        %1257 = vmatprep.subr.bf16.mxu0 0
        %1258 = vmatpush2.bf16.msra.mxu0 0
        %1259 = vmatprep.subr.bf16.mxu0 0
        %1260 = vmatpush2.bf16.msra.mxu0 0
        %1261 = vmatprep.subr.bf16.mxu0 0
        %1262 = vmatpush2.bf16.msra.mxu0 0
        %1263 = vmatprep.subr.bf16.mxu0 0
        %1264 = vmatpush2.bf16.msra.mxu0 0
        %1265 = vmatprep.subr.bf16.mxu0 0
        %1266 = vmatpush2.bf16.msra.mxu0 0
        %1267 = vmatprep.subr.bf16.mxu0 0
        %1268 = vmatpush2.bf16.msra.mxu0 0
        %1269 = vmatprep.subr.bf16.mxu0 0
        %1270 = vmatpush2.bf16.msra.mxu0 0
        %1271 = vmatprep.subr.bf16.mxu0 0
        %1272 = vmatpush2.bf16.msra.mxu0 0
        %1273 = vmatprep.mubr.bf16.mxu0 0
        %1274 = vmatmul.mubr.bf16.gmra.mxu0 %v1239
        %v1275 = vpop.f32.mrf.mxu0
        %v1276 = vadd.f32 %v1235, %v1275
        %v1277 = vpop.f32.mrf.mxu0
        %v1278 = vadd.f32 %v1235, %v1277
        %v1279 = vpop.f32.mrf.mxu0
        %v1280 = vpop.f32.mrf.mxu0
        %1281 = vdwg.mxu0
        %v1282 = vadd.f32 %v257, %v1276
        %v1283 = vadd.f32 %v258, %v1278
        %1284 = vst [vmem:[%s255] sm:$0xff] %v1282
        %1285 = vst [vmem:[%s255 + $0x8] sm:$0xff] %v1283
        %s1286 = sand.u32 %s120, 1
        %s1287 = scalar_lea.sflag [#allocation4], %s1286
        %s1288 = sand.u32 %s120, 1
        %s1289 = smul.addr %s1288, 16
        %s1290 = scalar_lea.vmem [#allocation10], %s1289
        // Predicated region
        $region53: #{tpu_custom_call.1} parent=35 // pred_check
          %p1291 = pneg %p130
        $region54: #{tpu_custom_call.1} parent=35 // pred_check_branch
          %1293 = sbr.rel (%p1291) target = $region56
        $region55: #{tpu_custom_call.1} parent=35 // pred_region
          %s1295 = ssub.s32 256, 256
          %1296 = vsyncadd %s1287, %s1295
          %s1297 = smul.addr %s23, 2
          %s1298 = smul.addr %s1297, 128
          %s1299 = scalar_lea.hbm %s4, %s1298
          %s1301 = sshll.u32 %s1290, 4
          %s1302 = int_to_ptr.vmem [resolvable:$true] %s1301
          %1304 = dma.vmem_to_hbm [thread:$0]  %s1302, 256, %s1299, %s1287
        $region56: #{tpu_custom_call.1} parent=35 // pred_fallthru
          _
      $region36: #{tpu_custom_call.1} parent=5 // pred_fallthru
        _
      %p1305 = scmp.le.s32.totalorder 2, %s18
      // Predicated region
      $region57: #{tpu_custom_call.1} parent=5 // pred_check
        %p1306 = pneg %p1305
      $region58: #{tpu_custom_call.1} parent=5 // pred_check_branch
        %1308 = sbr.rel (%p1306) target = $region60
      $region59: #{tpu_custom_call.1} parent=5 // pred_region
        %s1309 = ssub.s32 %s18, 2
        // Predicated region
        $region61: #{tpu_custom_call.1} parent=59 // pred_check
          %p1310 = pneg %p136
        $region62: #{tpu_custom_call.1} parent=59 // pred_check_branch
          %1312 = sbr.rel (%p1310) target = $region64
        $region63: #{tpu_custom_call.1} parent=59 // pred_region
          %s1313 = sand.u32 %s121, 1
          %s1314 = scalar_lea.sflag [#allocation4], %s1313
          %s1315 = sand.u32 %s121, 1
          %s1316 = smul.addr %s1315, 16
          %s1317 = scalar_lea.vmem [#allocation10], %s1316
          %1318 = dma.done %s1314, 256
        $region64: #{tpu_custom_call.1} parent=59 // pred_fallthru
          _
      $region60: #{tpu_custom_call.1} parent=5 // pred_fallthru
        _
    $region6: #{tpu_custom_call.1} parent=1 // loop_footer
      %s22 = sadd.s32 1, %s18
    $region7: #{tpu_custom_call.1} parent=1 // loop_footer_branch
      %17 = sbr.rel target = $region3
    $region8: #{tpu_custom_call.1} parent=1 // loop_exit
      _
    %1319 = vsyncpa [#allocation3], 1
    %s1320 = scalar_lea.sflag [#allocation3], 1
    %1321 = vsyncpa %s1320, 1
    %1322 = vsyncpa [#allocation6], 1
    %1323 = vsyncpa [#allocation9], 1
    %1324 = vsyncpa [#allocation4], 1
    %s1325 = scalar_lea.sflag [#allocation4], 1
    %1326 = vsyncpa %s1325, 1

</llo_original>
